<compile_context>
chip_gen: v7x
topology: tpu7x:2x2x1
jax: 0.10.0
libtpu: 0.0.40
codegen_flags: <defaults>
</compile_context>

<pallas_src>
import numpy as np
import jax
import jax.numpy as jnp
from jax.experimental import pallas as pl
from jax.experimental.pallas import tpu as pltpu


# ----------------------------------------------------------------------------
# In-kernel building blocks
# ----------------------------------------------------------------------------
def _lstm_cell(gates, c, H):
    """LSTM cell with a single sigmoid pass.

    The g-gate columns of every weight/bias feeding `gates` are pre-scaled by 2
    on the host, so tanh(z) == 2*sigmoid(2z) - 1 needs only one EUP pass over
    the full 4H width plus a cheap VPU scale on the H-wide g slice.
    """
    act = jax.nn.sigmoid(gates)
    i = act[:, 0 * H:1 * H]
    f = act[:, 1 * H:2 * H]
    g = 2.0 * act[:, 2 * H:3 * H] - 1.0
    o = act[:, 3 * H:4 * H]
    c_new = f * c + i * g
    return o * jnp.tanh(c_new), c_new


def _fwd_t0(x_ref, wih_f_ref, b_f_ref, B, H):
    """Forward direction: only output[0] is consumed, i.e. one step from zero
    state on the t=0 rows -> (B, E) @ (E, 4H), not (T*B, E) @ (E, 4H)."""
    g_f0 = jnp.dot(x_ref[0:B, :], wih_f_ref[...],
                   preferred_element_type=jnp.float32) + b_f_ref[...]
    h_f0, _ = _lstm_cell(g_f0, jnp.zeros((B, H), jnp.float32), H)
    return h_f0


def _bwd_recurrence(x_ref, cnt_ref, wih_b_ref, b_b_ref, whh_b_ref, B, H):
    """Backward direction reverse recurrence with packed-sequence masking.

    Returns the final hidden state as bf16 (the only consumer is a bf16 MXU
    matmul).  h is carried as a bf16 shadow so no per-step cast sits on the
    serial critical path; c stays f32.
    """
    T = cnt_ref.shape[0]
    # One lane-dense MXU matmul for ALL backward-direction input projections.
    g_bwd = jnp.dot(x_ref[...], wih_b_ref[...],
                    preferred_element_type=jnp.float32) + b_b_ref[...]

    whh_b = whh_b_ref[...]                               # hoisted out of the loop
    b_iota = jax.lax.broadcasted_iota(jnp.int32, (B, H), 0)
    h_bf = jnp.zeros((B, H), jnp.bfloat16)
    c = jnp.zeros((B, H), jnp.float32)
    for t in range(T - 1, -1, -1):                       # static unroll (T small)
        gates = g_bwd[t * B:(t + 1) * B, :] + jnp.dot(
            h_bf, whh_b, preferred_element_type=jnp.float32)
        h_new, c_new = _lstm_cell(gates, c, H)
        active = b_iota < cnt_ref[t]                     # sequence active at t ?
        h_bf = jnp.where(active, h_new.astype(jnp.bfloat16), h_bf)
        c = jnp.where(active, c_new, c)
    return h_bf


# ----------------------------------------------------------------------------
# Kernels
# ----------------------------------------------------------------------------
def _bilstm_proj_fused_kernel(x_ref, cnt_ref, wih_f_ref, wih_b_ref,
                              b_f_ref, b_b_ref, whh_b_ref,
                              w_out_f_ref, w_out_b_ref, o_ref):
    """Fused BiLSTM output[0] + proj_enc (unsort folded into the weight).

    x_ref:       (T*B, E) bf16  time-major, batch sorted by decreasing length
    cnt_ref:     (T,)     int32 SMEM; cnt[t] = #sequences with length > t
    wih_f_ref:   (E, 4H)  bf16  forward input weights (g cols x2)
    wih_b_ref:   (E, 4H)  bf16  backward input weights (g cols x2)
    b_f/b_b_ref: (1, 4H)  f32   biases (b_ih + b_hh, g cols x2)
    whh_b_ref:   (H, 4H)  bf16  backward recurrent weights (g cols x2)
    w_out_*_ref: (H, Dp)  bf16  proj_enc^T rows (forward / backward halves),
                                id_sort permutation folded, zero-padded to
                                Dp = lane-dense multiple of 128
    o_ref:       (B, Dp)  f32   lane-dense unmasked store; cols [0, D) valid
    """
    T = cnt_ref.shape[0]
    B = x_ref.shape[0] // T
    H = whh_b_ref.shape[0]

    h_f0 = _fwd_t0(x_ref, wih_f_ref, b_f_ref, B, H)
    # Forward half of proj_enc issued before the backward loop: independent of
    # the recurrence, so it hides under the serial chain.
    out_f = jnp.dot(h_f0.astype(jnp.bfloat16), w_out_f_ref[...],
                    preferred_element_type=jnp.float32)

    h_bwd = _bwd_recurrence(x_ref, cnt_ref, wih_b_ref, b_b_ref, whh_b_ref, B, H)

    o_ref[...] = out_f + jnp.dot(h_bwd, w_out_b_ref[...],
                                 preferred_element_type=jnp.float32)


# Fallback kernels (general B != 2*enc_size case; not used by the demo).
def _bilstm_out0_kernel(x_ref, cnt_ref, wih_f_ref, wih_b_ref,
                        b_f_ref, b_b_ref, whh_b_ref, o_ref):
    T = cnt_ref.shape[0]
    B = x_ref.shape[0] // T
    H = whh_b_ref.shape[0]
    h_f0 = _fwd_t0(x_ref, wih_f_ref, b_f_ref, B, H)
    h_bwd = _bwd_recurrence(x_ref, cnt_ref, wih_b_ref, b_b_ref, whh_b_ref, B, H)
    o_ref[:, 0:H] = h_f0
    o_ref[:, H:2 * H] = h_bwd.astype(jnp.float32)


def _proj_kernel(x_ref, w_t_ref, o_ref):
    o_ref[...] = jnp.dot(x_ref[...], w_t_ref[...],
                         preferred_element_type=jnp.float32)


# ----------------------------------------------------------------------------
# Jitted device-side wrappers (batch gather / weight permutation on device)
# ----------------------------------------------------------------------------
_VMEM = pl.BlockSpec(memory_space=pltpu.MemorySpace.VMEM)
_SMEM = pl.BlockSpec(memory_space=pltpu.MemorySpace.SMEM)


@jax.jit
def _forward_fused_device(sent, id_sort, counts, wih_f, wih_b, b_f, b_b,
                          whh_b, w_proj_t):
    T, B, E = sent.shape
    H = whh_b.shape[0]
    D = w_proj_t.shape[1]
    Dp = max(128, ((D + 127) // 128) * 128)              # lane-dense output slab

    # Device-side batch gather + flatten + bf16 cast (no per-call host copies).
    x2d = jnp.take(sent, id_sort, axis=1).reshape(T * B, E).astype(jnp.bfloat16)
    # output[0].index_select(1, id_unsort) folded into proj_enc:
    #   (out0 @ P) @ W^T == out0 @ (W^T)[id_sort]   (valid because B == D here)
    w_out = jnp.take(w_proj_t, id_sort, axis=0).astype(jnp.bfloat16)   # (D, D)
    pad = Dp - D
    w_out_f = jnp.pad(w_out[:H, :], ((0, 0), (0, pad)))                # (H, Dp)
    w_out_b = jnp.pad(w_out[H:, :], ((0, 0), (0, pad)))                # (H, Dp)

    proj_p = pl.pallas_call(
        _bilstm_proj_fused_kernel,
        out_shape=jax.ShapeDtypeStruct((B, Dp), jnp.float32),
        in_specs=[_VMEM, _SMEM, _VMEM, _VMEM, _VMEM, _VMEM, _VMEM, _VMEM, _VMEM],
        out_specs=_VMEM,
    )(x2d, counts, wih_f, wih_b, b_f, b_b, whh_b, w_out_f, w_out_b)
    return proj_p[:, :D]


@jax.jit
def _forward_general_device(sent, id_sort, id_unsort, counts,
                            wih_f, wih_b, b_f, b_b, whh_b, w_proj_t):
    T, B, E = sent.shape
    H = whh_b.shape[0]
    D = w_proj_t.shape[1]
    x2d = jnp.take(sent, id_sort, axis=1).reshape(T * B, E).astype(jnp.bfloat16)
    out0 = pl.pallas_call(
        _bilstm_out0_kernel,
        out_shape=jax.ShapeDtypeStruct((B, 2 * H), jnp.float32),
        in_specs=[_VMEM, _SMEM, _VMEM, _VMEM, _VMEM, _VMEM, _VMEM],
        out_specs=_VMEM,
    )(x2d, counts, wih_f, wih_b, b_f, b_b, whh_b)
    gathered = jnp.take(out0, id_unsort, axis=1)          # feature-dim gather
    flat = gathered.reshape(-1, D).astype(jnp.bfloat16)
    proj = pl.pallas_call(
        _proj_kernel,
        out_shape=jax.ShapeDtypeStruct((flat.shape[0], D), jnp.float32),
        in_specs=[_VMEM, _VMEM],
        out_specs=_VMEM,
    )(flat, w_proj_t.astype(jnp.bfloat16))
    return proj


# ----------------------------------------------------------------------------
# Module wrapper
# ----------------------------------------------------------------------------
def _scale_g_cols(w, H):
    """Multiply the cell-candidate ('g') gate columns by 2 (tanh-via-sigmoid).
    Exact in bf16: x2 only bumps the exponent, so bf16(2w) == 2*bf16(w)."""
    return w.at[..., 2 * H:3 * H].multiply(2.0)


class EncoderBiLSTMPallas:
    def __init__(self, emb_size, enc_size, batch_size, embedding=None,
                 pool_type=None, seed=0):
        self.emb_size = emb_size
        self.enc_size = enc_size
        self.batch_size = batch_size
        self.embedding = embedding          # unused in forward (as in reference)
        self.output_size = 2 * enc_size
        self.pool_type = pool_type

        H, E = enc_size, emb_size
        key = jax.random.PRNGKey(seed)
        ks = jax.random.split(key, 9)
        k = 1.0 / np.sqrt(H)
        u = lambda kk, shape: jax.random.uniform(kk, shape, jnp.float32, -k, k)
        # PyTorch nn.LSTM params (gate order i, f, g, o), stored transposed.
        self.wih_f = u(ks[0], (E, 4 * H))
        self.whh_f = u(ks[1], (H, 4 * H))   # h0 == 0 -> never contributes to output[0]
        self.b_f = u(ks[2], (1, 4 * H)) + u(ks[3], (1, 4 * H))   # b_ih + b_hh
        self.wih_b = u(ks[4], (E, 4 * H))
        self.whh_b = u(ks[5], (H, 4 * H))
        self.b_b = u(ks[6], (1, 4 * H)) + u(ks[7], (1, 4 * H))
        kp = 1.0 / np.sqrt(self.output_size)
        self.w_proj = jax.random.uniform(
            ks[8], (self.output_size, self.output_size), jnp.float32, -kp, kp)

        # Precomputed kernel operands: g-gate columns pre-scaled by 2 so the
        # kernel needs only ONE sigmoid pass per cell; bf16 matmul operands,
        # f32 biases / state math (fast path on v5e as well).
        self.wih_f_bf16 = _scale_g_cols(self.wih_f, H).astype(jnp.bfloat16)   # (E, 4H)
        self.wih_b_bf16 = _scale_g_cols(self.wih_b, H).astype(jnp.bfloat16)   # (E, 4H)
        self.whh_b_bf16 = _scale_g_cols(self.whh_b, H).astype(jnp.bfloat16)   # (H, 4H)
        self.b_f_s = _scale_g_cols(self.b_f, H)                               # (1, 4H) f32
        self.b_b_s = _scale_g_cols(self.b_b, H)                               # (1, 4H) f32
        self.w_proj_t = jnp.asarray(self.w_proj).T                            # (D, D) f32

    def forward(self, sent, sent_l):
        sent = jnp.asarray(sent, jnp.float32)
        sent_l = np.asarray(sent_l)
        assert sent_l.min() >= 1, "pack_padded_sequence forbids zero lengths"
        T, B, E = sent.shape
        D = self.output_size

        # Host-side sorting bookkeeping only (mirrors the reference forward);
        # the actual batch gather runs on device inside the jitted wrapper.
        id_sort = np.argsort(-sent_l)
        sorted_l = np.sort(sent_l)[::-1]
        id_unsort = np.argsort(id_sort)
        counts_np = (np.arange(T)[:, None] < sorted_l[None, :]).sum(1)
        counts = jnp.asarray(counts_np.astype(np.int32))
        id_sort_d = jnp.asarray(id_sort.astype(np.int32))

        if B == D:
            # output[0].index_select(1, id_unsort) gathers the FEATURE axis with
            # the batch-unsort permutation; with B == D the .view(-1, D) is a
            # no-op, so the gather commutes with proj_enc and is folded into the
            # weight row permutation inside the fused kernel.
            proj = _forward_fused_device(
                sent, id_sort_d, counts,
                self.wih_f_bf16, self.wih_b_bf16, self.b_f_s, self.b_b_s,
                self.whh_b_bf16, self.w_proj_t)
            output = proj.reshape(-1, 1, D)
        else:
            # General fallback: reference .view(-1, D) needs B*B % D == 0.
            assert (B * B) % D == 0, \
                "view(-1, 2*enc_size) requires B*B % (2*enc_size) == 0"
            id_unsort_d = jnp.asarray(id_unsort.astype(np.int32))
            proj = _forward_general_device(
                sent, id_sort_d, id_unsort_d, counts,
                self.wih_f_bf16, self.wih_b_bf16, self.b_f_s, self.b_b_s,
                self.whh_b_bf16, self.w_proj_t)
            output = proj.reshape(-1, 1, D)

        if self.pool_type is not None:
            # torch.max(output, 0)[0].squeeze(0) -- tiny reduction kept in JAX.
            output = jnp.max(output, axis=0).squeeze(0)
        return output


# ----------------------------------------------------------------------------
# Pure numpy reference (float64 math, bf16-rounded matmul operands to match
# the kernel's effective weights/inputs) of the same forward semantics.
# ----------------------------------------------------------------------------
def _ref_forward(model, sent, sent_l):
    bf = lambda a: np.asarray(jnp.asarray(np.asarray(a), jnp.bfloat16), np.float64)
    f64 = lambda a: np.asarray(a, np.float64)

    sent = np.asarray(sent, np.float64)
    sent_l = np.asarray(sent_l)
    T, B, E = sent.shape
    H = model.enc_size
    D = model.output_size

    id_sort = np.argsort(-sent_l)
    sorted_l = np.sort(sent_l)[::-1]
    id_unsort = np.argsort(id_sort)
    x = bf(sent[:, id_sort, :])
    mask = (np.arange(T)[:, None] < sorted_l[None, :]).astype(np.float64)

    wih_f = bf(model.wih_f); whh_f = bf(model.whh_f); b_f = f64(model.b_f)
    wih_b = bf(model.wih_b); whh_b = bf(model.whh_b); b_b = f64(model.b_b)
    w_proj_t = bf(np.asarray(model.w_proj).T)

    sigmoid = lambda v: 1.0 / (1.0 + np.exp(-v))

    def step(xt, h, c, wih, whh, b):
        g = xt @ wih + h @ whh + b
        i = sigmoid(g[:, :H]); f = sigmoid(g[:, H:2 * H])
        gg = np.tanh(g[:, 2 * H:3 * H]); o = sigmoid(g[:, 3 * H:])
        c_new = f * c + i * gg
        return o * np.tanh(c_new), c_new

    zeros = np.zeros((B, H))
    h_f0, _ = step(x[0], zeros, zeros, wih_f, whh_f, b_f)

    hb = np.zeros((B, H)); cb = np.zeros((B, H))
    for t in range(T - 1, -1, -1):
        m = mask[t][:, None]
        hn, cn = step(x[t], hb, cb, wih_b, whh_b, b_b)
        hb = m * hn + (1 - m) * hb
        cb = m * cn + (1 - m) * cb

    out0 = np.concatenate([h_f0, hb], axis=1)
    gathered = out0[:, id_unsort]
    flat = gathered.reshape(-1, D)
    proj = flat @ w_proj_t
    output = proj.reshape(-1, 1, D)
    if model.pool_type is not None:
        output = np.max(output, axis=0).squeeze(0)
    return output


if __name__ == "__main__":
    emb_size = 32
    enc_size = 16
    T = 8
    batch = 2 * enc_size        # B == 2*enc_size so the reference view() is legal

    key = jax.random.PRNGKey(0)
    k_x, k_l = jax.random.split(key)
    sent = jax.random.normal(k_x, (T, batch, emb_size), jnp.float32)
    sent_l = np.array(jax.random.randint(k_l, (batch,), 1, T + 1))
    sent_l[0] = T               # at least one full-length sequence

    model = EncoderBiLSTMPallas(emb_size, enc_size, batch,
                                embedding=None, pool_type=None, seed=0)
    out = model.forward(sent, sent_l)
    out = jax.block_until_ready(out)

    ref = _ref_forward(model, np.asarray(sent), sent_l)
    assert out.shape == ref.shape, (out.shape, ref.shape)
    np.testing.assert_allclose(np.asarray(out), ref, rtol=5e-2, atol=5e-2)
    print("KERNEL_OK")
</pallas_src>

<mosaic_0001>
module attributes {stable_mosaic.version = 11 : i64} {
  func.func @_bilstm_proj_fused_kernel(%arg0: memref<256x32xbf16, #tpu.memory_space<vmem>>, %arg1: memref<8xi32, #tpu.memory_space<smem>>, %arg2: memref<32x64xbf16, #tpu.memory_space<vmem>>, %arg3: memref<32x64xbf16, #tpu.memory_space<vmem>>, %arg4: memref<1x64xf32, #tpu.memory_space<vmem>>, %arg5: memref<1x64xf32, #tpu.memory_space<vmem>>, %arg6: memref<16x64xbf16, #tpu.memory_space<vmem>>, %arg7: memref<16x128xbf16, #tpu.memory_space<vmem>>, %arg8: memref<16x128xbf16, #tpu.memory_space<vmem>>, %arg9: memref<32x128xf32, #tpu.memory_space<vmem>>) attributes {dimension_semantics = [], scalar_prefetch = 0 : i64, scratch_operands = 0 : i64, tpu.core_type = #tpu.core_type<tc>} {
    %c0 = arith.constant 0 : index
    %c0_0 = arith.constant 0 : index
    %0 = vector.load %arg0[%c0, %c0_0] : memref<256x32xbf16, #tpu.memory_space<vmem>>, vector<32x32xbf16>
    %c0_1 = arith.constant 0 : index
    %c0_2 = arith.constant 0 : index
    %1 = vector.load %arg2[%c0_1, %c0_2] : memref<32x64xbf16, #tpu.memory_space<vmem>>, vector<32x64xbf16>
    %cst = arith.constant dense<0.000000e+00> : vector<32x64xf32>
    %2 = tpu.matmul %0, %1, %cst {dimension_numbers = #tpu.dot_dimension_numbers<[1], [0], [0], [1], [0, 0, 1, 1], [], []>} : vector<32x32xbf16>, vector<32x64xbf16>, vector<32x64xf32> -> vector<32x64xf32>
    %c0_3 = arith.constant 0 : index
    %c0_4 = arith.constant 0 : index
    %3 = vector.load %arg4[%c0_3, %c0_4] : memref<1x64xf32, #tpu.memory_space<vmem>>, vector<1x64xf32>
    %4 = vector.broadcast %3 : vector<1x64xf32> to vector<32x64xf32>
    %5 = arith.addf %2, %4 : vector<32x64xf32>
    %cst_5 = arith.constant 0.000000e+00 : f32
    %6 = vector.broadcast %cst_5 : f32 to vector<32x16xf32>
    %7 = arith.negf %5 : vector<32x64xf32>
    %8 = math.exp %7 : vector<32x64xf32>
    %cst_6 = arith.constant 1.000000e+00 : f32
    %9 = vector.broadcast %cst_6 : f32 to vector<32x64xf32>
    %10 = arith.addf %9, %8 : vector<32x64xf32>
    %11 = arith.divf %9, %10 : vector<32x64xf32>
    %12 = vector.extract_strided_slice %11 {offsets = [0, 0], sizes = [32, 16], strides = [1, 1]} : vector<32x64xf32> to vector<32x16xf32>
    %13 = vector.extract_strided_slice %11 {offsets = [0, 16], sizes = [32, 16], strides = [1, 1]} : vector<32x64xf32> to vector<32x16xf32>
    %14 = vector.extract_strided_slice %11 {offsets = [0, 32], sizes = [32, 16], strides = [1, 1]} : vector<32x64xf32> to vector<32x16xf32>
    %cst_7 = arith.constant 2.000000e+00 : f32
    %15 = vector.broadcast %cst_7 : f32 to vector<32x16xf32>
    %16 = arith.mulf %15, %14 : vector<32x16xf32>
    %cst_8 = arith.constant 1.000000e+00 : f32
    %17 = vector.broadcast %cst_8 : f32 to vector<32x16xf32>
    %18 = arith.subf %16, %17 : vector<32x16xf32>
    %19 = vector.extract_strided_slice %11 {offsets = [0, 48], sizes = [32, 16], strides = [1, 1]} : vector<32x64xf32> to vector<32x16xf32>
    %20 = arith.mulf %13, %6 : vector<32x16xf32>
    %21 = arith.mulf %12, %18 : vector<32x16xf32>
    %22 = arith.addf %20, %21 : vector<32x16xf32>
    %23 = math.tanh %22 : vector<32x16xf32>
    %24 = arith.mulf %19, %23 : vector<32x16xf32>
    %25 = arith.truncf %24 : vector<32x16xf32> to vector<32x16xbf16>
    %c0_9 = arith.constant 0 : index
    %c0_10 = arith.constant 0 : index
    %26 = vector.load %arg7[%c0_9, %c0_10] : memref<16x128xbf16, #tpu.memory_space<vmem>>, vector<16x128xbf16>
    %cst_11 = arith.constant dense<0.000000e+00> : vector<32x128xf32>
    %27 = tpu.matmul %25, %26, %cst_11 {dimension_numbers = #tpu.dot_dimension_numbers<[1], [0], [0], [1], [0, 0, 1, 1], [], []>} : vector<32x16xbf16>, vector<16x128xbf16>, vector<32x128xf32> -> vector<32x128xf32>
    %c0_12 = arith.constant 0 : index
    %c0_13 = arith.constant 0 : index
    %28 = vector.load %arg0[%c0_12, %c0_13] : memref<256x32xbf16, #tpu.memory_space<vmem>>, vector<256x32xbf16>
    %c0_14 = arith.constant 0 : index
    %c0_15 = arith.constant 0 : index
    %29 = vector.load %arg3[%c0_14, %c0_15] : memref<32x64xbf16, #tpu.memory_space<vmem>>, vector<32x64xbf16>
    %cst_16 = arith.constant dense<0.000000e+00> : vector<256x64xf32>
    %30 = tpu.matmul %28, %29, %cst_16 {dimension_numbers = #tpu.dot_dimension_numbers<[1], [0], [0], [1], [0, 0, 1, 1], [], []>} : vector<256x32xbf16>, vector<32x64xbf16>, vector<256x64xf32> -> vector<256x64xf32>
    %c0_17 = arith.constant 0 : index
    %c0_18 = arith.constant 0 : index
    %31 = vector.load %arg5[%c0_17, %c0_18] : memref<1x64xf32, #tpu.memory_space<vmem>>, vector<1x64xf32>
    %32 = vector.broadcast %31 : vector<1x64xf32> to vector<256x64xf32>
    %33 = arith.addf %30, %32 : vector<256x64xf32>
    %c0_19 = arith.constant 0 : index
    %c0_20 = arith.constant 0 : index
    %34 = vector.load %arg6[%c0_19, %c0_20] : memref<16x64xbf16, #tpu.memory_space<vmem>>, vector<16x64xbf16>
    %35 = tpu.iota {dimensions = array<i32: 0>} : vector<32x16xi32>
    %cst_21 = arith.constant 0.000000e+00 : bf16
    %36 = vector.broadcast %cst_21 : bf16 to vector<32x16xbf16>
    %cst_22 = arith.constant 0.000000e+00 : f32
    %37 = vector.broadcast %cst_22 : f32 to vector<32x16xf32>
    %38 = vector.extract_strided_slice %33 {offsets = [224, 0], sizes = [32, 64], strides = [1, 1]} : vector<256x64xf32> to vector<32x64xf32>
    %cst_23 = arith.constant dense<0.000000e+00> : vector<32x64xf32>
    %39 = tpu.matmul %36, %34, %cst_23 {dimension_numbers = #tpu.dot_dimension_numbers<[1], [0], [0], [1], [0, 0, 1, 1], [], []>} : vector<32x16xbf16>, vector<16x64xbf16>, vector<32x64xf32> -> vector<32x64xf32>
    %40 = arith.addf %38, %39 : vector<32x64xf32>
    %41 = arith.negf %40 : vector<32x64xf32>
    %42 = math.exp %41 : vector<32x64xf32>
    %cst_24 = arith.constant 1.000000e+00 : f32
    %43 = vector.broadcast %cst_24 : f32 to vector<32x64xf32>
    %44 = arith.addf %43, %42 : vector<32x64xf32>
    %45 = arith.divf %43, %44 : vector<32x64xf32>
    %46 = vector.extract_strided_slice %45 {offsets = [0, 0], sizes = [32, 16], strides = [1, 1]} : vector<32x64xf32> to vector<32x16xf32>
    %47 = vector.extract_strided_slice %45 {offsets = [0, 16], sizes = [32, 16], strides = [1, 1]} : vector<32x64xf32> to vector<32x16xf32>
    %48 = vector.extract_strided_slice %45 {offsets = [0, 32], sizes = [32, 16], strides = [1, 1]} : vector<32x64xf32> to vector<32x16xf32>
    %cst_25 = arith.constant 2.000000e+00 : f32
    %49 = vector.broadcast %cst_25 : f32 to vector<32x16xf32>
    %50 = arith.mulf %49, %48 : vector<32x16xf32>
    %cst_26 = arith.constant 1.000000e+00 : f32
    %51 = vector.broadcast %cst_26 : f32 to vector<32x16xf32>
    %52 = arith.subf %50, %51 : vector<32x16xf32>
    %53 = vector.extract_strided_slice %45 {offsets = [0, 48], sizes = [32, 16], strides = [1, 1]} : vector<32x64xf32> to vector<32x16xf32>
    %54 = arith.mulf %47, %37 : vector<32x16xf32>
    %55 = arith.mulf %46, %52 : vector<32x16xf32>
    %56 = arith.addf %54, %55 : vector<32x16xf32>
    %57 = math.tanh %56 : vector<32x16xf32>
    %58 = arith.mulf %53, %57 : vector<32x16xf32>
    %c7 = arith.constant 7 : index
    %59 = memref.load %arg1[%c7] : memref<8xi32, #tpu.memory_space<smem>>
    %60 = vector.broadcast %59 : i32 to vector<32x16xi32>
    %61 = arith.cmpi slt, %35, %60 : vector<32x16xi32>
    %62 = arith.truncf %58 : vector<32x16xf32> to vector<32x16xbf16>
    %63 = arith.select %61, %62, %36 : vector<32x16xi1>, vector<32x16xbf16>
    %64 = arith.select %61, %56, %37 : vector<32x16xi1>, vector<32x16xf32>
    %65 = vector.extract_strided_slice %33 {offsets = [192, 0], sizes = [32, 64], strides = [1, 1]} : vector<256x64xf32> to vector<32x64xf32>
    %cst_27 = arith.constant dense<0.000000e+00> : vector<32x64xf32>
    %66 = tpu.matmul %63, %34, %cst_27 {dimension_numbers = #tpu.dot_dimension_numbers<[1], [0], [0], [1], [0, 0, 1, 1], [], []>} : vector<32x16xbf16>, vector<16x64xbf16>, vector<32x64xf32> -> vector<32x64xf32>
    %67 = arith.addf %65, %66 : vector<32x64xf32>
    %68 = arith.negf %67 : vector<32x64xf32>
    %69 = math.exp %68 : vector<32x64xf32>
    %cst_28 = arith.constant 1.000000e+00 : f32
    %70 = vector.broadcast %cst_28 : f32 to vector<32x64xf32>
    %71 = arith.addf %70, %69 : vector<32x64xf32>
    %72 = arith.divf %70, %71 : vector<32x64xf32>
    %73 = vector.extract_strided_slice %72 {offsets = [0, 0], sizes = [32, 16], strides = [1, 1]} : vector<32x64xf32> to vector<32x16xf32>
    %74 = vector.extract_strided_slice %72 {offsets = [0, 16], sizes = [32, 16], strides = [1, 1]} : vector<32x64xf32> to vector<32x16xf32>
    %75 = vector.extract_strided_slice %72 {offsets = [0, 32], sizes = [32, 16], strides = [1, 1]} : vector<32x64xf32> to vector<32x16xf32>
    %cst_29 = arith.constant 2.000000e+00 : f32
    %76 = vector.broadcast %cst_29 : f32 to vector<32x16xf32>
    %77 = arith.mulf %76, %75 : vector<32x16xf32>
    %cst_30 = arith.constant 1.000000e+00 : f32
    %78 = vector.broadcast %cst_30 : f32 to vector<32x16xf32>
    %79 = arith.subf %77, %78 : vector<32x16xf32>
    %80 = vector.extract_strided_slice %72 {offsets = [0, 48], sizes = [32, 16], strides = [1, 1]} : vector<32x64xf32> to vector<32x16xf32>
    %81 = arith.mulf %74, %64 : vector<32x16xf32>
    %82 = arith.mulf %73, %79 : vector<32x16xf32>
    %83 = arith.addf %81, %82 : vector<32x16xf32>
    %84 = math.tanh %83 : vector<32x16xf32>
    %85 = arith.mulf %80, %84 : vector<32x16xf32>
    %c6 = arith.constant 6 : index
    %86 = memref.load %arg1[%c6] : memref<8xi32, #tpu.memory_space<smem>>
    %87 = vector.broadcast %86 : i32 to vector<32x16xi32>
    %88 = arith.cmpi slt, %35, %87 : vector<32x16xi32>
    %89 = arith.truncf %85 : vector<32x16xf32> to vector<32x16xbf16>
    %90 = arith.select %88, %89, %63 : vector<32x16xi1>, vector<32x16xbf16>
    %91 = arith.select %88, %83, %64 : vector<32x16xi1>, vector<32x16xf32>
    %92 = vector.extract_strided_slice %33 {offsets = [160, 0], sizes = [32, 64], strides = [1, 1]} : vector<256x64xf32> to vector<32x64xf32>
    %cst_31 = arith.constant dense<0.000000e+00> : vector<32x64xf32>
    %93 = tpu.matmul %90, %34, %cst_31 {dimension_numbers = #tpu.dot_dimension_numbers<[1], [0], [0], [1], [0, 0, 1, 1], [], []>} : vector<32x16xbf16>, vector<16x64xbf16>, vector<32x64xf32> -> vector<32x64xf32>
    %94 = arith.addf %92, %93 : vector<32x64xf32>
    %95 = arith.negf %94 : vector<32x64xf32>
    %96 = math.exp %95 : vector<32x64xf32>
    %cst_32 = arith.constant 1.000000e+00 : f32
    %97 = vector.broadcast %cst_32 : f32 to vector<32x64xf32>
    %98 = arith.addf %97, %96 : vector<32x64xf32>
    %99 = arith.divf %97, %98 : vector<32x64xf32>
    %100 = vector.extract_strided_slice %99 {offsets = [0, 0], sizes = [32, 16], strides = [1, 1]} : vector<32x64xf32> to vector<32x16xf32>
    %101 = vector.extract_strided_slice %99 {offsets = [0, 16], sizes = [32, 16], strides = [1, 1]} : vector<32x64xf32> to vector<32x16xf32>
    %102 = vector.extract_strided_slice %99 {offsets = [0, 32], sizes = [32, 16], strides = [1, 1]} : vector<32x64xf32> to vector<32x16xf32>
    %cst_33 = arith.constant 2.000000e+00 : f32
    %103 = vector.broadcast %cst_33 : f32 to vector<32x16xf32>
    %104 = arith.mulf %103, %102 : vector<32x16xf32>
    %cst_34 = arith.constant 1.000000e+00 : f32
    %105 = vector.broadcast %cst_34 : f32 to vector<32x16xf32>
    %106 = arith.subf %104, %105 : vector<32x16xf32>
    %107 = vector.extract_strided_slice %99 {offsets = [0, 48], sizes = [32, 16], strides = [1, 1]} : vector<32x64xf32> to vector<32x16xf32>
    %108 = arith.mulf %101, %91 : vector<32x16xf32>
    %109 = arith.mulf %100, %106 : vector<32x16xf32>
    %110 = arith.addf %108, %109 : vector<32x16xf32>
    %111 = math.tanh %110 : vector<32x16xf32>
    %112 = arith.mulf %107, %111 : vector<32x16xf32>
    %c5 = arith.constant 5 : index
    %113 = memref.load %arg1[%c5] : memref<8xi32, #tpu.memory_space<smem>>
    %114 = vector.broadcast %113 : i32 to vector<32x16xi32>
    %115 = arith.cmpi slt, %35, %114 : vector<32x16xi32>
    %116 = arith.truncf %112 : vector<32x16xf32> to vector<32x16xbf16>
    %117 = arith.select %115, %116, %90 : vector<32x16xi1>, vector<32x16xbf16>
    %118 = arith.select %115, %110, %91 : vector<32x16xi1>, vector<32x16xf32>
    %119 = vector.extract_strided_slice %33 {offsets = [128, 0], sizes = [32, 64], strides = [1, 1]} : vector<256x64xf32> to vector<32x64xf32>
    %cst_35 = arith.constant dense<0.000000e+00> : vector<32x64xf32>
    %120 = tpu.matmul %117, %34, %cst_35 {dimension_numbers = #tpu.dot_dimension_numbers<[1], [0], [0], [1], [0, 0, 1, 1], [], []>} : vector<32x16xbf16>, vector<16x64xbf16>, vector<32x64xf32> -> vector<32x64xf32>
    %121 = arith.addf %119, %120 : vector<32x64xf32>
    %122 = arith.negf %121 : vector<32x64xf32>
    %123 = math.exp %122 : vector<32x64xf32>
    %cst_36 = arith.constant 1.000000e+00 : f32
    %124 = vector.broadcast %cst_36 : f32 to vector<32x64xf32>
    %125 = arith.addf %124, %123 : vector<32x64xf32>
    %126 = arith.divf %124, %125 : vector<32x64xf32>
    %127 = vector.extract_strided_slice %126 {offsets = [0, 0], sizes = [32, 16], strides = [1, 1]} : vector<32x64xf32> to vector<32x16xf32>
    %128 = vector.extract_strided_slice %126 {offsets = [0, 16], sizes = [32, 16], strides = [1, 1]} : vector<32x64xf32> to vector<32x16xf32>
    %129 = vector.extract_strided_slice %126 {offsets = [0, 32], sizes = [32, 16], strides = [1, 1]} : vector<32x64xf32> to vector<32x16xf32>
    %cst_37 = arith.constant 2.000000e+00 : f32
    %130 = vector.broadcast %cst_37 : f32 to vector<32x16xf32>
    %131 = arith.mulf %130, %129 : vector<32x16xf32>
    %cst_38 = arith.constant 1.000000e+00 : f32
    %132 = vector.broadcast %cst_38 : f32 to vector<32x16xf32>
    %133 = arith.subf %131, %132 : vector<32x16xf32>
    %134 = vector.extract_strided_slice %126 {offsets = [0, 48], sizes = [32, 16], strides = [1, 1]} : vector<32x64xf32> to vector<32x16xf32>
    %135 = arith.mulf %128, %118 : vector<32x16xf32>
    %136 = arith.mulf %127, %133 : vector<32x16xf32>
    %137 = arith.addf %135, %136 : vector<32x16xf32>
    %138 = math.tanh %137 : vector<32x16xf32>
    %139 = arith.mulf %134, %138 : vector<32x16xf32>
    %c4 = arith.constant 4 : index
    %140 = memref.load %arg1[%c4] : memref<8xi32, #tpu.memory_space<smem>>
    %141 = vector.broadcast %140 : i32 to vector<32x16xi32>
    %142 = arith.cmpi slt, %35, %141 : vector<32x16xi32>
    %143 = arith.truncf %139 : vector<32x16xf32> to vector<32x16xbf16>
    %144 = arith.select %142, %143, %117 : vector<32x16xi1>, vector<32x16xbf16>
    %145 = arith.select %142, %137, %118 : vector<32x16xi1>, vector<32x16xf32>
    %146 = vector.extract_strided_slice %33 {offsets = [96, 0], sizes = [32, 64], strides = [1, 1]} : vector<256x64xf32> to vector<32x64xf32>
    %cst_39 = arith.constant dense<0.000000e+00> : vector<32x64xf32>
    %147 = tpu.matmul %144, %34, %cst_39 {dimension_numbers = #tpu.dot_dimension_numbers<[1], [0], [0], [1], [0, 0, 1, 1], [], []>} : vector<32x16xbf16>, vector<16x64xbf16>, vector<32x64xf32> -> vector<32x64xf32>
    %148 = arith.addf %146, %147 : vector<32x64xf32>
    %149 = arith.negf %148 : vector<32x64xf32>
    %150 = math.exp %149 : vector<32x64xf32>
    %cst_40 = arith.constant 1.000000e+00 : f32
    %151 = vector.broadcast %cst_40 : f32 to vector<32x64xf32>
    %152 = arith.addf %151, %150 : vector<32x64xf32>
    %153 = arith.divf %151, %152 : vector<32x64xf32>
    %154 = vector.extract_strided_slice %153 {offsets = [0, 0], sizes = [32, 16], strides = [1, 1]} : vector<32x64xf32> to vector<32x16xf32>
    %155 = vector.extract_strided_slice %153 {offsets = [0, 16], sizes = [32, 16], strides = [1, 1]} : vector<32x64xf32> to vector<32x16xf32>
    %156 = vector.extract_strided_slice %153 {offsets = [0, 32], sizes = [32, 16], strides = [1, 1]} : vector<32x64xf32> to vector<32x16xf32>
    %cst_41 = arith.constant 2.000000e+00 : f32
    %157 = vector.broadcast %cst_41 : f32 to vector<32x16xf32>
    %158 = arith.mulf %157, %156 : vector<32x16xf32>
    %cst_42 = arith.constant 1.000000e+00 : f32
    %159 = vector.broadcast %cst_42 : f32 to vector<32x16xf32>
    %160 = arith.subf %158, %159 : vector<32x16xf32>
    %161 = vector.extract_strided_slice %153 {offsets = [0, 48], sizes = [32, 16], strides = [1, 1]} : vector<32x64xf32> to vector<32x16xf32>
    %162 = arith.mulf %155, %145 : vector<32x16xf32>
    %163 = arith.mulf %154, %160 : vector<32x16xf32>
    %164 = arith.addf %162, %163 : vector<32x16xf32>
    %165 = math.tanh %164 : vector<32x16xf32>
    %166 = arith.mulf %161, %165 : vector<32x16xf32>
    %c3 = arith.constant 3 : index
    %167 = memref.load %arg1[%c3] : memref<8xi32, #tpu.memory_space<smem>>
    %168 = vector.broadcast %167 : i32 to vector<32x16xi32>
    %169 = arith.cmpi slt, %35, %168 : vector<32x16xi32>
    %170 = arith.truncf %166 : vector<32x16xf32> to vector<32x16xbf16>
    %171 = arith.select %169, %170, %144 : vector<32x16xi1>, vector<32x16xbf16>
    %172 = arith.select %169, %164, %145 : vector<32x16xi1>, vector<32x16xf32>
    %173 = vector.extract_strided_slice %33 {offsets = [64, 0], sizes = [32, 64], strides = [1, 1]} : vector<256x64xf32> to vector<32x64xf32>
    %cst_43 = arith.constant dense<0.000000e+00> : vector<32x64xf32>
    %174 = tpu.matmul %171, %34, %cst_43 {dimension_numbers = #tpu.dot_dimension_numbers<[1], [0], [0], [1], [0, 0, 1, 1], [], []>} : vector<32x16xbf16>, vector<16x64xbf16>, vector<32x64xf32> -> vector<32x64xf32>
    %175 = arith.addf %173, %174 : vector<32x64xf32>
    %176 = arith.negf %175 : vector<32x64xf32>
    %177 = math.exp %176 : vector<32x64xf32>
    %cst_44 = arith.constant 1.000000e+00 : f32
    %178 = vector.broadcast %cst_44 : f32 to vector<32x64xf32>
    %179 = arith.addf %178, %177 : vector<32x64xf32>
    %180 = arith.divf %178, %179 : vector<32x64xf32>
    %181 = vector.extract_strided_slice %180 {offsets = [0, 0], sizes = [32, 16], strides = [1, 1]} : vector<32x64xf32> to vector<32x16xf32>
    %182 = vector.extract_strided_slice %180 {offsets = [0, 16], sizes = [32, 16], strides = [1, 1]} : vector<32x64xf32> to vector<32x16xf32>
    %183 = vector.extract_strided_slice %180 {offsets = [0, 32], sizes = [32, 16], strides = [1, 1]} : vector<32x64xf32> to vector<32x16xf32>
    %cst_45 = arith.constant 2.000000e+00 : f32
    %184 = vector.broadcast %cst_45 : f32 to vector<32x16xf32>
    %185 = arith.mulf %184, %183 : vector<32x16xf32>
    %cst_46 = arith.constant 1.000000e+00 : f32
    %186 = vector.broadcast %cst_46 : f32 to vector<32x16xf32>
    %187 = arith.subf %185, %186 : vector<32x16xf32>
    %188 = vector.extract_strided_slice %180 {offsets = [0, 48], sizes = [32, 16], strides = [1, 1]} : vector<32x64xf32> to vector<32x16xf32>
    %189 = arith.mulf %182, %172 : vector<32x16xf32>
    %190 = arith.mulf %181, %187 : vector<32x16xf32>
    %191 = arith.addf %189, %190 : vector<32x16xf32>
    %192 = math.tanh %191 : vector<32x16xf32>
    %193 = arith.mulf %188, %192 : vector<32x16xf32>
    %c2 = arith.constant 2 : index
    %194 = memref.load %arg1[%c2] : memref<8xi32, #tpu.memory_space<smem>>
    %195 = vector.broadcast %194 : i32 to vector<32x16xi32>
    %196 = arith.cmpi slt, %35, %195 : vector<32x16xi32>
    %197 = arith.truncf %193 : vector<32x16xf32> to vector<32x16xbf16>
    %198 = arith.select %196, %197, %171 : vector<32x16xi1>, vector<32x16xbf16>
    %199 = arith.select %196, %191, %172 : vector<32x16xi1>, vector<32x16xf32>
    %200 = vector.extract_strided_slice %33 {offsets = [32, 0], sizes = [32, 64], strides = [1, 1]} : vector<256x64xf32> to vector<32x64xf32>
    %cst_47 = arith.constant dense<0.000000e+00> : vector<32x64xf32>
    %201 = tpu.matmul %198, %34, %cst_47 {dimension_numbers = #tpu.dot_dimension_numbers<[1], [0], [0], [1], [0, 0, 1, 1], [], []>} : vector<32x16xbf16>, vector<16x64xbf16>, vector<32x64xf32> -> vector<32x64xf32>
    %202 = arith.addf %200, %201 : vector<32x64xf32>
    %203 = arith.negf %202 : vector<32x64xf32>
    %204 = math.exp %203 : vector<32x64xf32>
    %cst_48 = arith.constant 1.000000e+00 : f32
    %205 = vector.broadcast %cst_48 : f32 to vector<32x64xf32>
    %206 = arith.addf %205, %204 : vector<32x64xf32>
    %207 = arith.divf %205, %206 : vector<32x64xf32>
    %208 = vector.extract_strided_slice %207 {offsets = [0, 0], sizes = [32, 16], strides = [1, 1]} : vector<32x64xf32> to vector<32x16xf32>
    %209 = vector.extract_strided_slice %207 {offsets = [0, 16], sizes = [32, 16], strides = [1, 1]} : vector<32x64xf32> to vector<32x16xf32>
    %210 = vector.extract_strided_slice %207 {offsets = [0, 32], sizes = [32, 16], strides = [1, 1]} : vector<32x64xf32> to vector<32x16xf32>
    %cst_49 = arith.constant 2.000000e+00 : f32
    %211 = vector.broadcast %cst_49 : f32 to vector<32x16xf32>
    %212 = arith.mulf %211, %210 : vector<32x16xf32>
    %cst_50 = arith.constant 1.000000e+00 : f32
    %213 = vector.broadcast %cst_50 : f32 to vector<32x16xf32>
    %214 = arith.subf %212, %213 : vector<32x16xf32>
    %215 = vector.extract_strided_slice %207 {offsets = [0, 48], sizes = [32, 16], strides = [1, 1]} : vector<32x64xf32> to vector<32x16xf32>
    %216 = arith.mulf %209, %199 : vector<32x16xf32>
    %217 = arith.mulf %208, %214 : vector<32x16xf32>
    %218 = arith.addf %216, %217 : vector<32x16xf32>
    %219 = math.tanh %218 : vector<32x16xf32>
    %220 = arith.mulf %215, %219 : vector<32x16xf32>
    %c1 = arith.constant 1 : index
    %221 = memref.load %arg1[%c1] : memref<8xi32, #tpu.memory_space<smem>>
    %222 = vector.broadcast %221 : i32 to vector<32x16xi32>
    %223 = arith.cmpi slt, %35, %222 : vector<32x16xi32>
    %224 = arith.truncf %220 : vector<32x16xf32> to vector<32x16xbf16>
    %225 = arith.select %223, %224, %198 : vector<32x16xi1>, vector<32x16xbf16>
    %226 = arith.select %223, %218, %199 : vector<32x16xi1>, vector<32x16xf32>
    %227 = vector.extract_strided_slice %33 {offsets = [0, 0], sizes = [32, 64], strides = [1, 1]} : vector<256x64xf32> to vector<32x64xf32>
    %cst_51 = arith.constant dense<0.000000e+00> : vector<32x64xf32>
    %228 = tpu.matmul %225, %34, %cst_51 {dimension_numbers = #tpu.dot_dimension_numbers<[1], [0], [0], [1], [0, 0, 1, 1], [], []>} : vector<32x16xbf16>, vector<16x64xbf16>, vector<32x64xf32> -> vector<32x64xf32>
    %229 = arith.addf %227, %228 : vector<32x64xf32>
    %230 = arith.negf %229 : vector<32x64xf32>
    %231 = math.exp %230 : vector<32x64xf32>
    %cst_52 = arith.constant 1.000000e+00 : f32
    %232 = vector.broadcast %cst_52 : f32 to vector<32x64xf32>
    %233 = arith.addf %232, %231 : vector<32x64xf32>
    %234 = arith.divf %232, %233 : vector<32x64xf32>
    %235 = vector.extract_strided_slice %234 {offsets = [0, 0], sizes = [32, 16], strides = [1, 1]} : vector<32x64xf32> to vector<32x16xf32>
    %236 = vector.extract_strided_slice %234 {offsets = [0, 16], sizes = [32, 16], strides = [1, 1]} : vector<32x64xf32> to vector<32x16xf32>
    %237 = vector.extract_strided_slice %234 {offsets = [0, 32], sizes = [32, 16], strides = [1, 1]} : vector<32x64xf32> to vector<32x16xf32>
    %cst_53 = arith.constant 2.000000e+00 : f32
    %238 = vector.broadcast %cst_53 : f32 to vector<32x16xf32>
    %239 = arith.mulf %238, %237 : vector<32x16xf32>
    %cst_54 = arith.constant 1.000000e+00 : f32
    %240 = vector.broadcast %cst_54 : f32 to vector<32x16xf32>
    %241 = arith.subf %239, %240 : vector<32x16xf32>
    %242 = vector.extract_strided_slice %234 {offsets = [0, 48], sizes = [32, 16], strides = [1, 1]} : vector<32x64xf32> to vector<32x16xf32>
    %243 = arith.mulf %236, %226 : vector<32x16xf32>
    %244 = arith.mulf %235, %241 : vector<32x16xf32>
    %245 = arith.addf %243, %244 : vector<32x16xf32>
    %246 = math.tanh %245 : vector<32x16xf32>
    %247 = arith.mulf %242, %246 : vector<32x16xf32>
    %c0_55 = arith.constant 0 : index
    %248 = memref.load %arg1[%c0_55] : memref<8xi32, #tpu.memory_space<smem>>
    %249 = vector.broadcast %248 : i32 to vector<32x16xi32>
    %250 = arith.cmpi slt, %35, %249 : vector<32x16xi32>
    %251 = arith.truncf %247 : vector<32x16xf32> to vector<32x16xbf16>
    %252 = arith.select %250, %251, %225 : vector<32x16xi1>, vector<32x16xbf16>
    %c0_56 = arith.constant 0 : index
    %c0_57 = arith.constant 0 : index
    %253 = vector.load %arg8[%c0_56, %c0_57] : memref<16x128xbf16, #tpu.memory_space<vmem>>, vector<16x128xbf16>
    %cst_58 = arith.constant dense<0.000000e+00> : vector<32x128xf32>
    %254 = tpu.matmul %252, %253, %cst_58 {dimension_numbers = #tpu.dot_dimension_numbers<[1], [0], [0], [1], [0, 0, 1, 1], [], []>} : vector<32x16xbf16>, vector<16x128xbf16>, vector<32x128xf32> -> vector<32x128xf32>
    %255 = arith.addf %27, %254 : vector<32x128xf32>
    %c0_59 = arith.constant 0 : index
    %c0_60 = arith.constant 0 : index
    %256 = vector.load %arg9[%c0_59, %c0_60] : memref<32x128xf32, #tpu.memory_space<vmem>>, vector<32x128xf32>
    tpu.vector_store %arg9[%c0_59, %c0_60], %255 {strides = array<i32>} : memref<32x128xf32, #tpu.memory_space<vmem>>, vector<32x128xf32>,
    return
  }
}

</mosaic_0001>

<llo_original>
// kernel: _forward_fused_device.1
$region0: #{_forward_fused_device.1}
  #allocation0 [shape = 'u32[]', space=smem, size = 0x4, offset = 0x4, fixed_abs, tag = 'smem constant byte address 0x4 - core index']
  #allocation1 [shape = 'u32[144,128]{1,0:T(1,128)}', space=vmem, size = 0x12000, scoped, tag = 'internal scratch']
  %s0 = inlined_call_operand.vmem [shape: bf16[256,32], index: 0, kind: input, shape index: {}]
  %s1 = inlined_call_operand.vmem [shape: s32[8], index: 1, kind: input, shape index: {}]
  %s2 = inlined_call_operand.vmem [shape: bf16[32,64], index: 2, kind: input, shape index: {}]
  %s3 = inlined_call_operand.vmem [shape: bf16[32,64], index: 3, kind: input, shape index: {}]
  %s4 = inlined_call_operand.vmem [shape: f32[1,64], index: 4, kind: input, shape index: {}]
  %s5 = inlined_call_operand.vmem [shape: f32[1,64], index: 5, kind: input, shape index: {}]
  %s6 = inlined_call_operand.vmem [shape: bf16[16,64], index: 6, kind: input, shape index: {}]
  %s7 = inlined_call_operand.vmem [shape: bf16[16,128], index: 7, kind: input, shape index: {}]
  %s8 = inlined_call_operand.vmem [shape: bf16[16,128], index: 8, kind: input, shape index: {}]
  %s9 = inlined_call_operand.hbm [shape: f32[32,128], index: 9, kind: output, shape index: {}]
  %s10 = sld [smem:[#allocation0]]
  $region50: #{_forward_fused_device.1} parent=0
    _
  %s12 = ssub.s32 1, %s10
  %s13 = scalar_select 0, %s12, %s10
  $region1: #{_forward_fused_device.1} parent=0
    #allocation2 [shape = 'u8[512]{0}', space=smem, size = 0x200, scoped, tag = 'input window, operand 1, single buffered']
    #allocation3 [shape = 's32[1]{0}', space=sflag, size = 0x4, scoped, tag = 'scoped memory for _forward_fused_device.1']
    #allocation4 [shape = 's32[1]{0}', space=sflag, size = 0x4, scoped, tag = 'scoped memory for _forward_fused_device.1']
    #allocation5 [shape = 'u8[16384]{0}', space=vmem, size = 0x4000, scoped, tag = 'output window, operand 0, single buffered']
    %14 = vsyncpa [#allocation4], 0
    %15 = vsyncpa [#allocation3], 0
    // Predicated region
    $region2: #{_forward_fused_device.1} parent=1 // pred_check
      _
    $region3: #{_forward_fused_device.1} parent=1 // pred_check_branch
      %17 = sbr.rel (0) target = $region5
    $region4: #{_forward_fused_device.1} parent=1 // pred_region
      _
    $region5: #{_forward_fused_device.1} parent=1 // pred_fallthru
      _
    // Predicated region
    $region6: #{_forward_fused_device.1} parent=1 // pred_check
      _
    $region7: #{_forward_fused_device.1} parent=1 // pred_check_branch
      %19 = sbr.rel (0) target = $region9
    $region8: #{_forward_fused_device.1} parent=1 // pred_region
      %s21 = ssub.s32 16, 16
      %22 = vsyncadd [#allocation4], %s21
      %s24 = sshll.u32 %s1, 4
      %s25 = int_to_ptr.vmem [resolvable:$true] %s24
      %27 = dma.vmem_to_smem %s25, 16, [#allocation2], [#allocation4]
    $region9: #{_forward_fused_device.1} parent=1 // pred_fallthru
      _
    // Predicated region
    $region10: #{_forward_fused_device.1} parent=1 // pred_check
      _
    $region11: #{_forward_fused_device.1} parent=1 // pred_check_branch
      %29 = sbr.rel (0) target = $region13
    $region12: #{_forward_fused_device.1} parent=1 // pred_region
      _
    $region13: #{_forward_fused_device.1} parent=1 // pred_fallthru
      _
    // Predicated region
    $region14: #{_forward_fused_device.1} parent=1 // pred_check
      _
    $region15: #{_forward_fused_device.1} parent=1 // pred_check_branch
      %31 = sbr.rel (0) target = $region17
    $region16: #{_forward_fused_device.1} parent=1 // pred_region
      _
    $region17: #{_forward_fused_device.1} parent=1 // pred_fallthru
      _
    // Predicated region
    $region18: #{_forward_fused_device.1} parent=1 // pred_check
      _
    $region19: #{_forward_fused_device.1} parent=1 // pred_check_branch
      %33 = sbr.rel (0) target = $region21
    $region20: #{_forward_fused_device.1} parent=1 // pred_region
      _
    $region21: #{_forward_fused_device.1} parent=1 // pred_fallthru
      _
    // Predicated region
    $region22: #{_forward_fused_device.1} parent=1 // pred_check
      _
    $region23: #{_forward_fused_device.1} parent=1 // pred_check_branch
      %35 = sbr.rel (0) target = $region25
    $region24: #{_forward_fused_device.1} parent=1 // pred_region
      _
    $region25: #{_forward_fused_device.1} parent=1 // pred_fallthru
      _
    // Predicated region
    $region26: #{_forward_fused_device.1} parent=1 // pred_check
      _
    $region27: #{_forward_fused_device.1} parent=1 // pred_check_branch
      %37 = sbr.rel (0) target = $region29
    $region28: #{_forward_fused_device.1} parent=1 // pred_region
      _
    $region29: #{_forward_fused_device.1} parent=1 // pred_fallthru
      _
    // Predicated region
    $region30: #{_forward_fused_device.1} parent=1 // pred_check
      _
    $region31: #{_forward_fused_device.1} parent=1 // pred_check_branch
      %39 = sbr.rel (0) target = $region33
    $region32: #{_forward_fused_device.1} parent=1 // pred_region
      _
    $region33: #{_forward_fused_device.1} parent=1 // pred_fallthru
      _
    // Predicated region
    $region34: #{_forward_fused_device.1} parent=1 // pred_check
      _
    $region35: #{_forward_fused_device.1} parent=1 // pred_check_branch
      %41 = sbr.rel (0) target = $region37
    $region36: #{_forward_fused_device.1} parent=1 // pred_region
      _
    $region37: #{_forward_fused_device.1} parent=1 // pred_fallthru
      _
    // Predicated region
    $region38: #{_forward_fused_device.1} parent=1 // pred_check
      _
    $region39: #{_forward_fused_device.1} parent=1 // pred_check_branch
      %43 = sbr.rel (0) target = $region41
    $region40: #{_forward_fused_device.1} parent=1 // pred_region
      %44 = dma.done [#allocation4], 16
    $region41: #{_forward_fused_device.1} parent=1 // pred_fallthru
      _
    %45 = sfence
    %v49 = vld [vmem:[%s0] sm:$0xf]
    %v50 = vld [vmem:[%s0 + $0x4] sm:$0xf]
    %v51 = vld [vmem:[%s0 + $0x8] sm:$0xf]
    %v52 = vld [vmem:[%s0 + $0xc] sm:$0xf]
    %v53 = vld [vmem:[%s2] sm:$0xf]
    %v54 = vld [vmem:[%s2 + $0x4] sm:$0xf]
    %v55 = vld [vmem:[%s2 + $0x8] sm:$0xf]
    %v56 = vld [vmem:[%s2 + $0xc] sm:$0xf]
    %v57 = vld [vmem:[%s4] sm:$0x1]
    %v59 = vlaneseq
    %v60 = vshrl.u32 %v59, 7
    %v61 = vsub.s32 0, %v60
    %v62 = vrot.slane %v57, %v61
    %v68 = vunpack.c.l.b16 %v49
    %v69 = vunpack.c.l.b16 %v50
    %v70 = vunpack.c.l.b16 %v51
    %v71 = vunpack.c.l.b16 %v52
    %v72 = vpack.c.b16 %v69, %v68
    %v73 = vpack.c.b16 %v71, %v70
    %v78 = vunpack.c.l.b16 %v53
    %v79 = vunpack.c.l.b16 %v54
    %v80 = vunpack.c.l.b16 %v55
    %v81 = vunpack.c.l.b16 %v56
    %v82 = vpack.c.b16 %v79, %v78
    %v83 = vpack.c.b16 %v81, %v80
    %vm86 = vcmask 261120
    %v88 = vsel %vm86, %v72, 0
    %v91 = vsel %vm86, %v73, 0
    %93 = vmatprep.subr.bf16.mxu0 0
    %94 = vmatpush1.bf16.msra.mxu0 %v82
    %95 = vmatprep.subr.bf16.mxu0 0
    %96 = vmatpush1.bf16.msra.mxu0 %v83
    %97 = vmatprep.subr.bf16.mxu0 0
    %98 = vmatpush1.bf16.msra.mxu0 0
    %99 = vmatprep.subr.bf16.mxu0 0
    %100 = vmatpush1.bf16.msra.mxu0 0
    %101 = vmatprep.subr.bf16.mxu0 0
    %102 = vmatpush1.bf16.msra.mxu0 0
    %103 = vmatprep.subr.bf16.mxu0 0
    %104 = vmatpush1.bf16.msra.mxu0 0
    %105 = vmatprep.subr.bf16.mxu0 0
    %106 = vmatpush1.bf16.msra.mxu0 0
    %107 = vmatprep.subr.bf16.mxu0 0
    %108 = vmatpush1.bf16.msra.mxu0 0
    %109 = vmatprep.subr.bf16.mxu0 0
    %110 = vmatpush1.bf16.msra.mxu0 0
    %111 = vmatprep.subr.bf16.mxu0 0
    %112 = vmatpush1.bf16.msra.mxu0 0
    %113 = vmatprep.subr.bf16.mxu0 0
    %114 = vmatpush1.bf16.msra.mxu0 0
    %115 = vmatprep.subr.bf16.mxu0 0
    %116 = vmatpush1.bf16.msra.mxu0 0
    %117 = vmatprep.subr.bf16.mxu0 0
    %118 = vmatpush1.bf16.msra.mxu0 0
    %119 = vmatprep.subr.bf16.mxu0 0
    %120 = vmatpush1.bf16.msra.mxu0 0
    %121 = vmatprep.subr.bf16.mxu0 0
    %122 = vmatpush1.bf16.msra.mxu0 0
    %123 = vmatprep.subr.bf16.mxu0 0
    %124 = vmatpush1.bf16.msra.mxu0 0
    %125 = vmatprep.mubr.bf16.mxu0 0
    %126 = vmatmul.mubr.bf16.gmra.mrb[0].mxu0 %v88
    %v127 = vpop.f32.mrb[0].mxu0
    %v128 = vadd.f32 %v62, %v127
    %v129 = vpop.f32.mrb[0].mxu0
    %v130 = vpop.f32.mrb[0].mxu0
    %v131 = vadd.f32 %v62, %v130
    %v132 = vpop.f32.mrb[0].mxu0
    %133 = vmatprep.mubr.bf16.mxu0 0
    %134 = vmatmul.mubr.bf16.gmra.mrb[0].mxu0 %v91
    %v135 = vpop.f32.mrb[0].mxu0
    %v136 = vadd.f32 %v62, %v135
    %v137 = vpop.f32.mrb[0].mxu0
    %v138 = vpop.f32.mrb[0].mxu0
    %v139 = vadd.f32 %v62, %v138
    %v140 = vpop.f32.mrb[0].mxu0
    %141 = vdwg.mxu0
    %v142 = vxor.u32 %v128, 2147483648
    %v143 = vxor.u32 %v131, 2147483648
    %v144 = vxor.u32 %v136, 2147483648
    %v145 = vxor.u32 %v139, 2147483648
    %v146 = vmul.f32 %v142, 1.442695
    %v147 = vpow.pop %v146
    %v148 = vmul.f32 %v143, 1.442695
    %v149 = vpow.pop %v148
    %v150 = vmul.f32 %v144, 1.442695
    %v151 = vpow.pop %v150
    %v152 = vmul.f32 %v145, 1.442695
    %v153 = vpow.pop %v152
    %v154 = vadd.f32 %v147, 1.0
    %v155 = vadd.f32 %v149, 1.0
    %v156 = vadd.f32 %v151, 1.0
    %v157 = vadd.f32 %v153, 1.0
    %v158 = vrcp.pop %v154
    %v159 = vmul.f32 1.0, %v158
    %v160 = vrcp.pop %v155
    %v161 = vmul.f32 1.0, %v160
    %v162 = vrcp.pop %v156
    %v163 = vmul.f32 1.0, %v162
    %v164 = vrcp.pop %v157
    %v165 = vmul.f32 1.0, %v164
    %v166 = vmul.f32 %v159, 2.0
    %v167 = vmul.f32 %v161, 2.0
    %v168 = vmul.f32 %v163, 2.0
    %v169 = vmul.f32 %v165, 2.0
    %v170 = vsub.f32 %v166, 1.0
    %v171 = vsub.f32 %v167, 1.0
    %v172 = vsub.f32 %v168, 1.0
    %v173 = vsub.f32 %v169, 1.0
    %v174 = vmul.f32 %v159, 0.0
    %v175 = vmul.f32 %v161, 0.0
    %v176 = vmul.f32 %v163, 0.0
    %v177 = vmul.f32 %v165, 0.0
    %182 = vrot.lane.b32.xlu0 %v170, 96
    %v183 = vpop.permute.xlu0 %182
    %184 = vrot.lane.b32.xlu0 %v171, 96
    %v185 = vpop.permute.xlu0 %184
    %186 = vrot.lane.b32.xlu0 %v172, 96
    %v187 = vpop.permute.xlu0 %186
    %188 = vrot.lane.b32.xlu0 %v173, 96
    %v189 = vpop.permute.xlu0 %188
    %v194 = vmul.f32 %v159, %v183
    %v195 = vmul.f32 %v161, %v185
    %v196 = vmul.f32 %v163, %v187
    %v197 = vmul.f32 %v165, %v189
    %202 = vrot.lane.b32.xlu0 %v194, 16
    %v203 = vpop.permute.xlu0 %202
    %204 = vrot.lane.b32.xlu0 %v195, 16
    %v205 = vpop.permute.xlu0 %204
    %206 = vrot.lane.b32.xlu0 %v196, 16
    %v207 = vpop.permute.xlu0 %206
    %208 = vrot.lane.b32.xlu0 %v197, 16
    %v209 = vpop.permute.xlu0 %208
    %v214 = vadd.f32 %v174, %v203
    %v215 = vadd.f32 %v175, %v205
    %v216 = vadd.f32 %v176, %v207
    %v217 = vadd.f32 %v177, %v209
    %v218 = vtanh.pop %v214
    %v219 = vtanh.pop %v215
    %v220 = vtanh.pop %v216
    %v221 = vtanh.pop %v217
    %226 = vrot.lane.b32.xlu0 %v218, 32
    %v227 = vpop.permute.xlu0 %226
    %228 = vrot.lane.b32.xlu0 %v219, 32
    %v229 = vpop.permute.xlu0 %228
    %230 = vrot.lane.b32.xlu0 %v220, 32
    %v231 = vpop.permute.xlu0 %230
    %232 = vrot.lane.b32.xlu0 %v221, 32
    %v233 = vpop.permute.xlu0 %232
    %v238 = vmul.f32 %v159, %v227
    %v239 = vmul.f32 %v161, %v229
    %v240 = vmul.f32 %v163, %v231
    %v241 = vmul.f32 %v165, %v233
    %v242 = vpack.c.bf16 %v239, %v238
    %v243 = vpack.c.bf16 %v241, %v240
    %v244 = vld [vmem:[%s7] sm:$0xf]
    %v245 = vld [vmem:[%s7 + $0x4] sm:$0xf]
    %v246 = vld [vmem:[%s0] sm:$0xf]
    %v247 = vld [vmem:[%s0 + $0x4] sm:$0xf]
    %v248 = vld [vmem:[%s0 + $0x8] sm:$0xf]
    %v249 = vld [vmem:[%s0 + $0xc] sm:$0xf]
    %v250 = vld [vmem:[%s0 + $0x10] sm:$0xf]
    %v251 = vld [vmem:[%s0 + $0x14] sm:$0xf]
    %v252 = vld [vmem:[%s0 + $0x18] sm:$0xf]
    %v253 = vld [vmem:[%s0 + $0x1c] sm:$0xf]
    %v254 = vld [vmem:[%s0 + $0x20] sm:$0xf]
    %v255 = vld [vmem:[%s0 + $0x24] sm:$0xf]
    %v256 = vld [vmem:[%s0 + $0x28] sm:$0xf]
    %v257 = vld [vmem:[%s0 + $0x2c] sm:$0xf]
    %v258 = vld [vmem:[%s0 + $0x30] sm:$0xf]
    %v259 = vld [vmem:[%s0 + $0x34] sm:$0xf]
    %v260 = vld [vmem:[%s0 + $0x38] sm:$0xf]
    %v261 = vld [vmem:[%s0 + $0x3c] sm:$0xf]
    %v262 = vld [vmem:[%s0 + $0x40] sm:$0xf]
    %v263 = vld [vmem:[%s0 + $0x44] sm:$0xf]
    %v264 = vld [vmem:[%s0 + $0x48] sm:$0xf]
    %v265 = vld [vmem:[%s0 + $0x4c] sm:$0xf]
    %v266 = vld [vmem:[%s0 + $0x50] sm:$0xf]
    %v267 = vld [vmem:[%s0 + $0x54] sm:$0xf]
    %v268 = vld [vmem:[%s0 + $0x58] sm:$0xf]
    %v269 = vld [vmem:[%s0 + $0x5c] sm:$0xf]
    %v270 = vld [vmem:[%s0 + $0x60] sm:$0xf]
    %v271 = vld [vmem:[%s0 + $0x64] sm:$0xf]
    %v272 = vld [vmem:[%s0 + $0x68] sm:$0xf]
    %v273 = vld [vmem:[%s0 + $0x6c] sm:$0xf]
    %v274 = vld [vmem:[%s0 + $0x70] sm:$0xf]
    %v275 = vld [vmem:[%s0 + $0x74] sm:$0xf]
    %v276 = vld [vmem:[%s0 + $0x78] sm:$0xf]
    %v277 = vld [vmem:[%s0 + $0x7c] sm:$0xf]
    %v278 = vld [vmem:[%s3] sm:$0xf]
    %v279 = vld [vmem:[%s3 + $0x4] sm:$0xf]
    %v280 = vld [vmem:[%s3 + $0x8] sm:$0xf]
    %v281 = vld [vmem:[%s3 + $0xc] sm:$0xf]
    %v282 = vld [vmem:[%s5] sm:$0x1]
    %v284 = vlaneseq
    %v285 = vshrl.u32 %v284, 7
    %v286 = vsub.s32 0, %v285
    %v287 = vrot.slane %v282, %v286
    %v321 = vunpack.c.l.b16 %v246
    %v322 = vunpack.c.l.b16 %v247
    %v323 = vunpack.c.l.b16 %v248
    %v324 = vunpack.c.l.b16 %v249
    %v325 = vunpack.c.l.b16 %v250
    %v326 = vunpack.c.l.b16 %v251
    %v327 = vunpack.c.l.b16 %v252
    %v328 = vunpack.c.l.b16 %v253
    %v329 = vunpack.c.l.b16 %v254
    %v330 = vunpack.c.l.b16 %v255
    %v331 = vunpack.c.l.b16 %v256
    %v332 = vunpack.c.l.b16 %v257
    %v333 = vunpack.c.l.b16 %v258
    %v334 = vunpack.c.l.b16 %v259
    %v335 = vunpack.c.l.b16 %v260
    %v336 = vunpack.c.l.b16 %v261
    %v337 = vunpack.c.l.b16 %v262
    %v338 = vunpack.c.l.b16 %v263
    %v339 = vunpack.c.l.b16 %v264
    %v340 = vunpack.c.l.b16 %v265
    %v341 = vunpack.c.l.b16 %v266
    %v342 = vunpack.c.l.b16 %v267
    %v343 = vunpack.c.l.b16 %v268
    %v344 = vunpack.c.l.b16 %v269
    %v345 = vunpack.c.l.b16 %v270
    %v346 = vunpack.c.l.b16 %v271
    %v347 = vunpack.c.l.b16 %v272
    %v348 = vunpack.c.l.b16 %v273
    %v349 = vunpack.c.l.b16 %v274
    %v350 = vunpack.c.l.b16 %v275
    %v351 = vunpack.c.l.b16 %v276
    %v352 = vunpack.c.l.b16 %v277
    %v353 = vpack.c.b16 %v322, %v321
    %v354 = vpack.c.b16 %v324, %v323
    %v355 = vpack.c.b16 %v326, %v325
    %v356 = vpack.c.b16 %v328, %v327
    %v357 = vpack.c.b16 %v330, %v329
    %v358 = vpack.c.b16 %v332, %v331
    %v359 = vpack.c.b16 %v334, %v333
    %v360 = vpack.c.b16 %v336, %v335
    %v361 = vpack.c.b16 %v338, %v337
    %v362 = vpack.c.b16 %v340, %v339
    %v363 = vpack.c.b16 %v342, %v341
    %v364 = vpack.c.b16 %v344, %v343
    %v365 = vpack.c.b16 %v346, %v345
    %v366 = vpack.c.b16 %v348, %v347
    %v367 = vpack.c.b16 %v350, %v349
    %v368 = vpack.c.b16 %v352, %v351
    %v373 = vunpack.c.l.b16 %v278
    %v374 = vunpack.c.l.b16 %v279
    %v375 = vunpack.c.l.b16 %v280
    %v376 = vunpack.c.l.b16 %v281
    %v377 = vpack.c.b16 %v374, %v373
    %v378 = vpack.c.b16 %v376, %v375
    %v382 = vsel %vm86, %v353, 0
    %v385 = vsel %vm86, %v354, 0
    %v388 = vsel %vm86, %v355, 0
    %v391 = vsel %vm86, %v356, 0
    %v394 = vsel %vm86, %v357, 0
    %v397 = vsel %vm86, %v358, 0
    %v400 = vsel %vm86, %v359, 0
    %v403 = vsel %vm86, %v360, 0
    %v406 = vsel %vm86, %v361, 0
    %v409 = vsel %vm86, %v362, 0
    %v412 = vsel %vm86, %v363, 0
    %v415 = vsel %vm86, %v364, 0
    %v418 = vsel %vm86, %v365, 0
    %v421 = vsel %vm86, %v366, 0
    %v424 = vsel %vm86, %v367, 0
    %v427 = vsel %vm86, %v368, 0
    %429 = vmatprep.subr.bf16.mxu0 0
    %430 = vmatpush1.bf16.msra.mxu0 %v377
    %431 = vmatprep.subr.bf16.mxu0 0
    %432 = vmatpush1.bf16.msra.mxu0 %v378
    %433 = vmatprep.subr.bf16.mxu0 0
    %434 = vmatpush1.bf16.msra.mxu0 0
    %435 = vmatprep.subr.bf16.mxu0 0
    %436 = vmatpush1.bf16.msra.mxu0 0
    %437 = vmatprep.subr.bf16.mxu0 0
    %438 = vmatpush1.bf16.msra.mxu0 0
    %439 = vmatprep.subr.bf16.mxu0 0
    %440 = vmatpush1.bf16.msra.mxu0 0
    %441 = vmatprep.subr.bf16.mxu0 0
    %442 = vmatpush1.bf16.msra.mxu0 0
    %443 = vmatprep.subr.bf16.mxu0 0
    %444 = vmatpush1.bf16.msra.mxu0 0
    %445 = vmatprep.subr.bf16.mxu0 0
    %446 = vmatpush1.bf16.msra.mxu0 0
    %447 = vmatprep.subr.bf16.mxu0 0
    %448 = vmatpush1.bf16.msra.mxu0 0
    %449 = vmatprep.subr.bf16.mxu0 0
    %450 = vmatpush1.bf16.msra.mxu0 0
    %451 = vmatprep.subr.bf16.mxu0 0
    %452 = vmatpush1.bf16.msra.mxu0 0
    %453 = vmatprep.subr.bf16.mxu0 0
    %454 = vmatpush1.bf16.msra.mxu0 0
    %455 = vmatprep.subr.bf16.mxu0 0
    %456 = vmatpush1.bf16.msra.mxu0 0
    %457 = vmatprep.subr.bf16.mxu0 0
    %458 = vmatpush1.bf16.msra.mxu0 0
    %459 = vmatprep.subr.bf16.mxu0 0
    %460 = vmatpush1.bf16.msra.mxu0 0
    %461 = vmatprep.mubr.bf16.mxu0 0
    %462 = vmatmul.mubr.bf16.gmra.mrb[0].mxu0 %v382
    %v463 = vpop.f32.mrb[0].mxu0
    %v464 = vadd.f32 %v287, %v463
    %v465 = vpop.f32.mrb[0].mxu0
    %v466 = vpop.f32.mrb[0].mxu0
    %v467 = vadd.f32 %v287, %v466
    %v468 = vpop.f32.mrb[0].mxu0
    %469 = vmatprep.mubr.bf16.mxu0 0
    %470 = vmatmul.mubr.bf16.gmra.mrb[0].mxu0 %v385
    %v471 = vpop.f32.mrb[0].mxu0
    %v472 = vadd.f32 %v287, %v471
    %v473 = vpop.f32.mrb[0].mxu0
    %v474 = vpop.f32.mrb[0].mxu0
    %v475 = vadd.f32 %v287, %v474
    %v476 = vpop.f32.mrb[0].mxu0
    %477 = vmatprep.mubr.bf16.mxu0 0
    %478 = vmatmul.mubr.bf16.gmra.mrb[0].mxu0 %v388
    %v479 = vpop.f32.mrb[0].mxu0
    %v480 = vadd.f32 %v287, %v479
    %v481 = vpop.f32.mrb[0].mxu0
    %v482 = vpop.f32.mrb[0].mxu0
    %v483 = vadd.f32 %v287, %v482
    %v484 = vpop.f32.mrb[0].mxu0
    %485 = vmatprep.mubr.bf16.mxu0 0
    %486 = vmatmul.mubr.bf16.gmra.mrb[0].mxu0 %v391
    %v487 = vpop.f32.mrb[0].mxu0
    %v488 = vadd.f32 %v287, %v487
    %v489 = vpop.f32.mrb[0].mxu0
    %v490 = vpop.f32.mrb[0].mxu0
    %v491 = vadd.f32 %v287, %v490
    %v492 = vpop.f32.mrb[0].mxu0
    %493 = vmatprep.mubr.bf16.mxu0 0
    %494 = vmatmul.mubr.bf16.gmra.mrb[0].mxu0 %v394
    %v495 = vpop.f32.mrb[0].mxu0
    %v496 = vadd.f32 %v287, %v495
    %v497 = vpop.f32.mrb[0].mxu0
    %v498 = vpop.f32.mrb[0].mxu0
    %v499 = vadd.f32 %v287, %v498
    %v500 = vpop.f32.mrb[0].mxu0
    %501 = vmatprep.mubr.bf16.mxu0 0
    %502 = vmatmul.mubr.bf16.gmra.mrb[0].mxu0 %v397
    %v503 = vpop.f32.mrb[0].mxu0
    %v504 = vadd.f32 %v287, %v503
    %v505 = vpop.f32.mrb[0].mxu0
    %v506 = vpop.f32.mrb[0].mxu0
    %v507 = vadd.f32 %v287, %v506
    %v508 = vpop.f32.mrb[0].mxu0
    %509 = vmatprep.mubr.bf16.mxu0 0
    %510 = vmatmul.mubr.bf16.gmra.mrb[0].mxu0 %v400
    %v511 = vpop.f32.mrb[0].mxu0
    %v512 = vadd.f32 %v287, %v511
    %v513 = vpop.f32.mrb[0].mxu0
    %v514 = vpop.f32.mrb[0].mxu0
    %v515 = vadd.f32 %v287, %v514
    %v516 = vpop.f32.mrb[0].mxu0
    %517 = vmatprep.mubr.bf16.mxu0 0
    %518 = vmatmul.mubr.bf16.gmra.mrb[0].mxu0 %v403
    %v519 = vpop.f32.mrb[0].mxu0
    %v520 = vadd.f32 %v287, %v519
    %v521 = vpop.f32.mrb[0].mxu0
    %v522 = vpop.f32.mrb[0].mxu0
    %v523 = vadd.f32 %v287, %v522
    %v524 = vpop.f32.mrb[0].mxu0
    %525 = vmatprep.mubr.bf16.mxu0 0
    %526 = vmatmul.mubr.bf16.gmra.mrb[0].mxu0 %v406
    %v527 = vpop.f32.mrb[0].mxu0
    %v528 = vadd.f32 %v287, %v527
    %v529 = vpop.f32.mrb[0].mxu0
    %v530 = vpop.f32.mrb[0].mxu0
    %v531 = vadd.f32 %v287, %v530
    %v532 = vpop.f32.mrb[0].mxu0
    %533 = vmatprep.mubr.bf16.mxu0 0
    %534 = vmatmul.mubr.bf16.gmra.mrb[0].mxu0 %v409
    %v535 = vpop.f32.mrb[0].mxu0
    %v536 = vadd.f32 %v287, %v535
    %v537 = vpop.f32.mrb[0].mxu0
    %v538 = vpop.f32.mrb[0].mxu0
    %v539 = vadd.f32 %v287, %v538
    %v540 = vpop.f32.mrb[0].mxu0
    %541 = vmatprep.mubr.bf16.mxu0 0
    %542 = vmatmul.mubr.bf16.gmra.mrb[0].mxu0 %v412
    %v543 = vpop.f32.mrb[0].mxu0
    %v544 = vadd.f32 %v287, %v543
    %v545 = vpop.f32.mrb[0].mxu0
    %v546 = vpop.f32.mrb[0].mxu0
    %v547 = vadd.f32 %v287, %v546
    %v548 = vpop.f32.mrb[0].mxu0
    %549 = vmatprep.mubr.bf16.mxu0 0
    %550 = vmatmul.mubr.bf16.gmra.mrb[0].mxu0 %v415
    %v551 = vpop.f32.mrb[0].mxu0
    %v552 = vadd.f32 %v287, %v551
    %v553 = vpop.f32.mrb[0].mxu0
    %v554 = vpop.f32.mrb[0].mxu0
    %v555 = vadd.f32 %v287, %v554
    %v556 = vpop.f32.mrb[0].mxu0
    %557 = vmatprep.mubr.bf16.mxu0 0
    %558 = vmatmul.mubr.bf16.gmra.mrb[0].mxu0 %v418
    %v559 = vpop.f32.mrb[0].mxu0
    %v560 = vadd.f32 %v287, %v559
    %v561 = vpop.f32.mrb[0].mxu0
    %v562 = vpop.f32.mrb[0].mxu0
    %v563 = vadd.f32 %v287, %v562
    %v564 = vpop.f32.mrb[0].mxu0
    %565 = vmatprep.mubr.bf16.mxu0 0
    %566 = vmatmul.mubr.bf16.gmra.mrb[0].mxu0 %v421
    %v567 = vpop.f32.mrb[0].mxu0
    %v568 = vadd.f32 %v287, %v567
    %v569 = vpop.f32.mrb[0].mxu0
    %v570 = vpop.f32.mrb[0].mxu0
    %v571 = vadd.f32 %v287, %v570
    %v572 = vpop.f32.mrb[0].mxu0
    %573 = vmatprep.mubr.bf16.mxu0 0
    %574 = vmatmul.mubr.bf16.gmra.mrb[0].mxu0 %v424
    %v575 = vpop.f32.mrb[0].mxu0
    %v576 = vadd.f32 %v287, %v575
    %v577 = vpop.f32.mrb[0].mxu0
    %v578 = vpop.f32.mrb[0].mxu0
    %v579 = vadd.f32 %v287, %v578
    %v580 = vpop.f32.mrb[0].mxu0
    %581 = vmatprep.mubr.bf16.mxu0 0
    %582 = vmatmul.mubr.bf16.gmra.mrb[0].mxu0 %v427
    %v583 = vpop.f32.mrb[0].mxu0
    %v584 = vadd.f32 %v287, %v583
    %v585 = vpop.f32.mrb[0].mxu0
    %v586 = vpop.f32.mrb[0].mxu0
    %v587 = vadd.f32 %v287, %v586
    %v588 = vpop.f32.mrb[0].mxu0
    %589 = vdwg.mxu0
    %v590 = vld [vmem:[%s6] sm:$0xf]
    %v591 = vld [vmem:[%s6 + $0x4] sm:$0xf]
    %v592 = vlaneseq
    %v593 = vshrl.u32 %v592, 7
    %v594 = vadd.s32 %v593, 8
    %v595 = vadd.s32 %v593, 16
    %v596 = vadd.s32 %v593, 24
    %v599 = vunpack.c.l.b16 %v590
    %v600 = vunpack.c.l.b16 %v591
    %v601 = vpack.c.b16 %v600, %v599
    %vm603 = vcmask 130048
    %v605 = vsel %vm603, 0, 0
    %607 = vmatprep.subr.bf16.mxu0 0
    %608 = vmatpush1.bf16.msra.mxu0 %v601
    %609 = vmatprep.subr.bf16.mxu0 0
    %610 = vmatpush1.bf16.msra.mxu0 0
    %611 = vmatprep.subr.bf16.mxu0 0
    %612 = vmatpush1.bf16.msra.mxu0 0
    %613 = vmatprep.subr.bf16.mxu0 0
    %614 = vmatpush1.bf16.msra.mxu0 0
    %615 = vmatprep.subr.bf16.mxu0 0
    %616 = vmatpush1.bf16.msra.mxu0 0
    %617 = vmatprep.subr.bf16.mxu0 0
    %618 = vmatpush1.bf16.msra.mxu0 0
    %619 = vmatprep.subr.bf16.mxu0 0
    %620 = vmatpush1.bf16.msra.mxu0 0
    %621 = vmatprep.subr.bf16.mxu0 0
    %622 = vmatpush1.bf16.msra.mxu0 0
    %623 = vmatprep.subr.bf16.mxu0 0
    %624 = vmatpush1.bf16.msra.mxu0 0
    %625 = vmatprep.subr.bf16.mxu0 0
    %626 = vmatpush1.bf16.msra.mxu0 0
    %627 = vmatprep.subr.bf16.mxu0 0
    %628 = vmatpush1.bf16.msra.mxu0 0
    %629 = vmatprep.subr.bf16.mxu0 0
    %630 = vmatpush1.bf16.msra.mxu0 0
    %631 = vmatprep.subr.bf16.mxu0 0
    %632 = vmatpush1.bf16.msra.mxu0 0
    %633 = vmatprep.subr.bf16.mxu0 0
    %634 = vmatpush1.bf16.msra.mxu0 0
    %635 = vmatprep.subr.bf16.mxu0 0
    %636 = vmatpush1.bf16.msra.mxu0 0
    %637 = vmatprep.subr.bf16.mxu0 0
    %638 = vmatpush1.bf16.msra.mxu0 0
    %639 = vmatprep.mubr.bf16.mxu0 0
    %640 = vmatmul.mubr.bf16.gmra.mrb[0].mxu0 %v605
    %v641 = vpop.f32.mrb[0].mxu0
    %v642 = vadd.f32 0.0, %v641
    %v643 = vpop.f32.mrb[0].mxu0
    %v644 = vpop.f32.mrb[0].mxu0
    %v645 = vadd.f32 0.0, %v644
    %v646 = vpop.f32.mrb[0].mxu0
    %647 = vmatprep.mubr.bf16.mxu0 0
    %648 = vmatmul.mubr.bf16.gmra.mrb[0].mxu0 %v605
    %v649 = vpop.f32.mrb[0].mxu0
    %v650 = vadd.f32 0.0, %v649
    %v651 = vpop.f32.mrb[0].mxu0
    %v652 = vpop.f32.mrb[0].mxu0
    %v653 = vadd.f32 0.0, %v652
    %v654 = vpop.f32.mrb[0].mxu0
    %655 = vdwg.mxu0
    %v656 = vadd.f32 %v576, %v642
    %v657 = vadd.f32 %v579, %v645
    %v658 = vadd.f32 %v584, %v650
    %v659 = vadd.f32 %v587, %v653
    %v660 = vxor.u32 %v656, 2147483648
    %v661 = vxor.u32 %v657, 2147483648
    %v662 = vxor.u32 %v658, 2147483648
    %v663 = vxor.u32 %v659, 2147483648
    %v664 = vmul.f32 %v660, 1.442695
    %v665 = vpow.pop %v664
    %v666 = vmul.f32 %v661, 1.442695
    %v667 = vpow.pop %v666
    %v668 = vmul.f32 %v662, 1.442695
    %v669 = vpow.pop %v668
    %v670 = vmul.f32 %v663, 1.442695
    %v671 = vpow.pop %v670
    %v672 = vadd.f32 %v665, 1.0
    %v673 = vadd.f32 %v667, 1.0
    %v674 = vadd.f32 %v669, 1.0
    %v675 = vadd.f32 %v671, 1.0
    %v676 = vrcp.pop %v672
    %v677 = vmul.f32 1.0, %v676
    %v678 = vrcp.pop %v673
    %v679 = vmul.f32 1.0, %v678
    %v680 = vrcp.pop %v674
    %v681 = vmul.f32 1.0, %v680
    %v682 = vrcp.pop %v675
    %v683 = vmul.f32 1.0, %v682
    %v684 = vmul.f32 %v677, 2.0
    %v685 = vmul.f32 %v679, 2.0
    %v686 = vmul.f32 %v681, 2.0
    %v687 = vmul.f32 %v683, 2.0
    %v688 = vsub.f32 %v684, 1.0
    %v689 = vsub.f32 %v685, 1.0
    %v690 = vsub.f32 %v686, 1.0
    %v691 = vsub.f32 %v687, 1.0
    %v692 = vmul.f32 %v677, 0.0
    %v693 = vmul.f32 %v679, 0.0
    %v694 = vmul.f32 %v681, 0.0
    %v695 = vmul.f32 %v683, 0.0
    %700 = vrot.lane.b32.xlu0 %v688, 96
    %v701 = vpop.permute.xlu0 %700
    %702 = vrot.lane.b32.xlu0 %v689, 96
    %v703 = vpop.permute.xlu0 %702
    %704 = vrot.lane.b32.xlu0 %v690, 96
    %v705 = vpop.permute.xlu0 %704
    %706 = vrot.lane.b32.xlu0 %v691, 96
    %v707 = vpop.permute.xlu0 %706
    %v712 = vmul.f32 %v677, %v701
    %v713 = vmul.f32 %v679, %v703
    %v714 = vmul.f32 %v681, %v705
    %v715 = vmul.f32 %v683, %v707
    %720 = vrot.lane.b32.xlu0 %v712, 16
    %v721 = vpop.permute.xlu0 %720
    %722 = vrot.lane.b32.xlu0 %v713, 16
    %v723 = vpop.permute.xlu0 %722
    %724 = vrot.lane.b32.xlu0 %v714, 16
    %v725 = vpop.permute.xlu0 %724
    %726 = vrot.lane.b32.xlu0 %v715, 16
    %v727 = vpop.permute.xlu0 %726
    %v732 = vadd.f32 %v692, %v721
    %v733 = vadd.f32 %v693, %v723
    %v734 = vadd.f32 %v694, %v725
    %v735 = vadd.f32 %v695, %v727
    %v736 = vtanh.pop %v732
    %v737 = vtanh.pop %v733
    %v738 = vtanh.pop %v734
    %v739 = vtanh.pop %v735
    %744 = vrot.lane.b32.xlu0 %v736, 32
    %v745 = vpop.permute.xlu0 %744
    %746 = vrot.lane.b32.xlu0 %v737, 32
    %v747 = vpop.permute.xlu0 %746
    %748 = vrot.lane.b32.xlu0 %v738, 32
    %v749 = vpop.permute.xlu0 %748
    %750 = vrot.lane.b32.xlu0 %v739, 32
    %v751 = vpop.permute.xlu0 %750
    %v756 = vmul.f32 %v677, %v745
    %v757 = vmul.f32 %v679, %v747
    %v758 = vmul.f32 %v681, %v749
    %v759 = vmul.f32 %v683, %v751
    %s760 = sld [smem:[#allocation2 + $0x7]]
    %v761 = vstv %s760
    %vm762 = vcmp.lt.s32.totalorder %v593, %v761
    %vm763 = vcmp.lt.s32.totalorder %v594, %v761
    %vm764 = vcmp.lt.s32.totalorder %v595, %v761
    %vm765 = vcmp.lt.s32.totalorder %v596, %v761
    %v766 = vpack.c.bf16 %v757, %v756
    %v767 = vpack.c.bf16 %v759, %v758
    %vm768 = vmpackc.low %vm762, %vm762
    %vm769 = vmpackc.low %vm763, %vm763
    %vm770 = vmpackc.low %vm764, %vm764
    %vm771 = vmpackc.low %vm765, %vm765
    %v772 = vsel %vm768, 65537, 0
    %v773 = vsel %vm769, 65537, 0
    %v774 = vsel %vm770, 65537, 0
    %v775 = vsel %vm771, 65537, 0
    %v776 = vunpack.c.l.b16 %v772
    %v777 = vunpack.c.l.b16 %v773
    %v778 = vunpack.c.l.b16 %v774
    %v779 = vunpack.c.l.b16 %v775
    %v780 = vpack.c.b16 %v777, %v776
    %v781 = vpack.c.b16 %v779, %v778
    %vm782 = vcmp.ne.s16.totalorder %v780, 0
    %vm783 = vcmp.ne.s16.totalorder %v781, 0
    %v784 = vsel %vm782, %v766, 0
    %v785 = vsel %vm783, %v767, 0
    %v786 = vsel %vm762, %v732, 0.0
    %v787 = vsel %vm763, %v733, 0.0
    %v788 = vsel %vm764, %v734, 0.0
    %v789 = vsel %vm765, %v735, 0.0
    %792 = vrot.lane.b32.xlu0 %v784, 80
    %v793 = vpop.permute.xlu0 %792
    %794 = vrot.lane.b32.xlu0 %v785, 80
    %v795 = vpop.permute.xlu0 %794
    %v797 = vsel %vm603, %v793, 0
    %v800 = vsel %vm603, %v795, 0
    %802 = vmatprep.subr.bf16.mxu0 0
    %803 = vmatpush1.bf16.msra.mxu0 %v601
    %804 = vmatprep.subr.bf16.mxu0 0
    %805 = vmatpush1.bf16.msra.mxu0 0
    %806 = vmatprep.subr.bf16.mxu0 0
    %807 = vmatpush1.bf16.msra.mxu0 0
    %808 = vmatprep.subr.bf16.mxu0 0
    %809 = vmatpush1.bf16.msra.mxu0 0
    %810 = vmatprep.subr.bf16.mxu0 0
    %811 = vmatpush1.bf16.msra.mxu0 0
    %812 = vmatprep.subr.bf16.mxu0 0
    %813 = vmatpush1.bf16.msra.mxu0 0
    %814 = vmatprep.subr.bf16.mxu0 0
    %815 = vmatpush1.bf16.msra.mxu0 0
    %816 = vmatprep.subr.bf16.mxu0 0
    %817 = vmatpush1.bf16.msra.mxu0 0
    %818 = vmatprep.subr.bf16.mxu0 0
    %819 = vmatpush1.bf16.msra.mxu0 0
    %820 = vmatprep.subr.bf16.mxu0 0
    %821 = vmatpush1.bf16.msra.mxu0 0
    %822 = vmatprep.subr.bf16.mxu0 0
    %823 = vmatpush1.bf16.msra.mxu0 0
    %824 = vmatprep.subr.bf16.mxu0 0
    %825 = vmatpush1.bf16.msra.mxu0 0
    %826 = vmatprep.subr.bf16.mxu0 0
    %827 = vmatpush1.bf16.msra.mxu0 0
    %828 = vmatprep.subr.bf16.mxu0 0
    %829 = vmatpush1.bf16.msra.mxu0 0
    %830 = vmatprep.subr.bf16.mxu0 0
    %831 = vmatpush1.bf16.msra.mxu0 0
    %832 = vmatprep.subr.bf16.mxu0 0
    %833 = vmatpush1.bf16.msra.mxu0 0
    %834 = vmatprep.mubr.bf16.mxu0 0
    %835 = vmatmul.mubr.bf16.gmra.mrb[0].mxu0 %v797
    %v836 = vpop.f32.mrb[0].mxu0
    %v837 = vadd.f32 0.0, %v836
    %v838 = vpop.f32.mrb[0].mxu0
    %v839 = vpop.f32.mrb[0].mxu0
    %v840 = vadd.f32 0.0, %v839
    %v841 = vpop.f32.mrb[0].mxu0
    %842 = vmatprep.mubr.bf16.mxu0 0
    %843 = vmatmul.mubr.bf16.gmra.mrb[0].mxu0 %v800
    %v844 = vpop.f32.mrb[0].mxu0
    %v845 = vadd.f32 0.0, %v844
    %v846 = vpop.f32.mrb[0].mxu0
    %v847 = vpop.f32.mrb[0].mxu0
    %v848 = vadd.f32 0.0, %v847
    %v849 = vpop.f32.mrb[0].mxu0
    %850 = vdwg.mxu0
    %v851 = vadd.f32 %v560, %v837
    %v852 = vadd.f32 %v563, %v840
    %v853 = vadd.f32 %v568, %v845
    %v854 = vadd.f32 %v571, %v848
    %v855 = vxor.u32 %v851, 2147483648
    %v856 = vxor.u32 %v852, 2147483648
    %v857 = vxor.u32 %v853, 2147483648
    %v858 = vxor.u32 %v854, 2147483648
    %v859 = vmul.f32 %v855, 1.442695
    %v860 = vpow.pop %v859
    %v861 = vmul.f32 %v856, 1.442695
    %v862 = vpow.pop %v861
    %v863 = vmul.f32 %v857, 1.442695
    %v864 = vpow.pop %v863
    %v865 = vmul.f32 %v858, 1.442695
    %v866 = vpow.pop %v865
    %v867 = vadd.f32 %v860, 1.0
    %v868 = vadd.f32 %v862, 1.0
    %v869 = vadd.f32 %v864, 1.0
    %v870 = vadd.f32 %v866, 1.0
    %v871 = vrcp.pop %v867
    %v872 = vmul.f32 1.0, %v871
    %v873 = vrcp.pop %v868
    %v874 = vmul.f32 1.0, %v873
    %v875 = vrcp.pop %v869
    %v876 = vmul.f32 1.0, %v875
    %v877 = vrcp.pop %v870
    %v878 = vmul.f32 1.0, %v877
    %v879 = vmul.f32 %v872, 2.0
    %v880 = vmul.f32 %v874, 2.0
    %v881 = vmul.f32 %v876, 2.0
    %v882 = vmul.f32 %v878, 2.0
    %v883 = vsub.f32 %v879, 1.0
    %v884 = vsub.f32 %v880, 1.0
    %v885 = vsub.f32 %v881, 1.0
    %v886 = vsub.f32 %v882, 1.0
    %v887 = vmul.f32 %v872, %v786
    %v888 = vmul.f32 %v874, %v787
    %v889 = vmul.f32 %v876, %v788
    %v890 = vmul.f32 %v878, %v789
    %895 = vrot.lane.b32.xlu0 %v883, 96
    %v896 = vpop.permute.xlu0 %895
    %897 = vrot.lane.b32.xlu0 %v884, 96
    %v898 = vpop.permute.xlu0 %897
    %899 = vrot.lane.b32.xlu0 %v885, 96
    %v900 = vpop.permute.xlu0 %899
    %901 = vrot.lane.b32.xlu0 %v886, 96
    %v902 = vpop.permute.xlu0 %901
    %v907 = vmul.f32 %v872, %v896
    %v908 = vmul.f32 %v874, %v898
    %v909 = vmul.f32 %v876, %v900
    %v910 = vmul.f32 %v878, %v902
    %915 = vrot.lane.b32.xlu0 %v907, 16
    %v916 = vpop.permute.xlu0 %915
    %917 = vrot.lane.b32.xlu0 %v908, 16
    %v918 = vpop.permute.xlu0 %917
    %919 = vrot.lane.b32.xlu0 %v909, 16
    %v920 = vpop.permute.xlu0 %919
    %921 = vrot.lane.b32.xlu0 %v910, 16
    %v922 = vpop.permute.xlu0 %921
    %v927 = vadd.f32 %v887, %v916
    %v928 = vadd.f32 %v888, %v918
    %v929 = vadd.f32 %v889, %v920
    %v930 = vadd.f32 %v890, %v922
    %v931 = vtanh.pop %v927
    %v932 = vtanh.pop %v928
    %v933 = vtanh.pop %v929
    %v934 = vtanh.pop %v930
    %939 = vrot.lane.b32.xlu0 %v931, 32
    %v940 = vpop.permute.xlu0 %939
    %941 = vrot.lane.b32.xlu0 %v932, 32
    %v942 = vpop.permute.xlu0 %941
    %943 = vrot.lane.b32.xlu0 %v933, 32
    %v944 = vpop.permute.xlu0 %943
    %945 = vrot.lane.b32.xlu0 %v934, 32
    %v946 = vpop.permute.xlu0 %945
    %v951 = vmul.f32 %v872, %v940
    %v952 = vmul.f32 %v874, %v942
    %v953 = vmul.f32 %v876, %v944
    %v954 = vmul.f32 %v878, %v946
    %s955 = sld [smem:[#allocation2 + $0x6]]
    %v956 = vstv %s955
    %vm957 = vcmp.lt.s32.totalorder %v593, %v956
    %vm958 = vcmp.lt.s32.totalorder %v594, %v956
    %vm959 = vcmp.lt.s32.totalorder %v595, %v956
    %vm960 = vcmp.lt.s32.totalorder %v596, %v956
    %v961 = vpack.c.bf16 %v952, %v951
    %v962 = vpack.c.bf16 %v954, %v953
    %vm963 = vmpackc.low %vm957, %vm957
    %vm964 = vmpackc.low %vm958, %vm958
    %vm965 = vmpackc.low %vm959, %vm959
    %vm966 = vmpackc.low %vm960, %vm960
    %v967 = vsel %vm963, 65537, 0
    %v968 = vsel %vm964, 65537, 0
    %v969 = vsel %vm965, 65537, 0
    %v970 = vsel %vm966, 65537, 0
    %v971 = vunpack.c.l.b16 %v967
    %v972 = vunpack.c.l.b16 %v968
    %v973 = vunpack.c.l.b16 %v969
    %v974 = vunpack.c.l.b16 %v970
    %v975 = vpack.c.b16 %v972, %v971
    %v976 = vpack.c.b16 %v974, %v973
    %vm977 = vcmp.ne.s16.totalorder %v975, 0
    %vm978 = vcmp.ne.s16.totalorder %v976, 0
    %v979 = vsel %vm977, %v961, %v784
    %v980 = vsel %vm978, %v962, %v785
    %v981 = vsel %vm957, %v927, %v786
    %v982 = vsel %vm958, %v928, %v787
    %v983 = vsel %vm959, %v929, %v788
    %v984 = vsel %vm960, %v930, %v789
    %987 = vrot.lane.b32.xlu0 %v979, 80
    %v988 = vpop.permute.xlu0 %987
    %989 = vrot.lane.b32.xlu0 %v980, 80
    %v990 = vpop.permute.xlu0 %989
    %v992 = vsel %vm603, %v988, 0
    %v995 = vsel %vm603, %v990, 0
    %997 = vmatprep.subr.bf16.mxu0 0
    %998 = vmatpush1.bf16.msra.mxu0 %v601
    %999 = vmatprep.subr.bf16.mxu0 0
    %1000 = vmatpush1.bf16.msra.mxu0 0
    %1001 = vmatprep.subr.bf16.mxu0 0
    %1002 = vmatpush1.bf16.msra.mxu0 0
    %1003 = vmatprep.subr.bf16.mxu0 0
    %1004 = vmatpush1.bf16.msra.mxu0 0
    %1005 = vmatprep.subr.bf16.mxu0 0
    %1006 = vmatpush1.bf16.msra.mxu0 0
    %1007 = vmatprep.subr.bf16.mxu0 0
    %1008 = vmatpush1.bf16.msra.mxu0 0
    %1009 = vmatprep.subr.bf16.mxu0 0
    %1010 = vmatpush1.bf16.msra.mxu0 0
    %1011 = vmatprep.subr.bf16.mxu0 0
    %1012 = vmatpush1.bf16.msra.mxu0 0
    %1013 = vmatprep.subr.bf16.mxu0 0
    %1014 = vmatpush1.bf16.msra.mxu0 0
    %1015 = vmatprep.subr.bf16.mxu0 0
    %1016 = vmatpush1.bf16.msra.mxu0 0
    %1017 = vmatprep.subr.bf16.mxu0 0
    %1018 = vmatpush1.bf16.msra.mxu0 0
    %1019 = vmatprep.subr.bf16.mxu0 0
    %1020 = vmatpush1.bf16.msra.mxu0 0
    %1021 = vmatprep.subr.bf16.mxu0 0
    %1022 = vmatpush1.bf16.msra.mxu0 0
    %1023 = vmatprep.subr.bf16.mxu0 0
    %1024 = vmatpush1.bf16.msra.mxu0 0
    %1025 = vmatprep.subr.bf16.mxu0 0
    %1026 = vmatpush1.bf16.msra.mxu0 0
    %1027 = vmatprep.subr.bf16.mxu0 0
    %1028 = vmatpush1.bf16.msra.mxu0 0
    %1029 = vmatprep.mubr.bf16.mxu0 0
    %1030 = vmatmul.mubr.bf16.gmra.mrb[0].mxu0 %v992
    %v1031 = vpop.f32.mrb[0].mxu0
    %v1032 = vadd.f32 0.0, %v1031
    %v1033 = vpop.f32.mrb[0].mxu0
    %v1034 = vpop.f32.mrb[0].mxu0
    %v1035 = vadd.f32 0.0, %v1034
    %v1036 = vpop.f32.mrb[0].mxu0
    %1037 = vmatprep.mubr.bf16.mxu0 0
    %1038 = vmatmul.mubr.bf16.gmra.mrb[0].mxu0 %v995
    %v1039 = vpop.f32.mrb[0].mxu0
    %v1040 = vadd.f32 0.0, %v1039
    %v1041 = vpop.f32.mrb[0].mxu0
    %v1042 = vpop.f32.mrb[0].mxu0
    %v1043 = vadd.f32 0.0, %v1042
    %v1044 = vpop.f32.mrb[0].mxu0
    %1045 = vdwg.mxu0
    %v1046 = vadd.f32 %v544, %v1032
    %v1047 = vadd.f32 %v547, %v1035
    %v1048 = vadd.f32 %v552, %v1040
    %v1049 = vadd.f32 %v555, %v1043
    %v1050 = vxor.u32 %v1046, 2147483648
    %v1051 = vxor.u32 %v1047, 2147483648
    %v1052 = vxor.u32 %v1048, 2147483648
    %v1053 = vxor.u32 %v1049, 2147483648
    %v1054 = vmul.f32 %v1050, 1.442695
    %v1055 = vpow.pop %v1054
    %v1056 = vmul.f32 %v1051, 1.442695
    %v1057 = vpow.pop %v1056
    %v1058 = vmul.f32 %v1052, 1.442695
    %v1059 = vpow.pop %v1058
    %v1060 = vmul.f32 %v1053, 1.442695
    %v1061 = vpow.pop %v1060
    %v1062 = vadd.f32 %v1055, 1.0
    %v1063 = vadd.f32 %v1057, 1.0
    %v1064 = vadd.f32 %v1059, 1.0
    %v1065 = vadd.f32 %v1061, 1.0
    %v1066 = vrcp.pop %v1062
    %v1067 = vmul.f32 1.0, %v1066
    %v1068 = vrcp.pop %v1063
    %v1069 = vmul.f32 1.0, %v1068
    %v1070 = vrcp.pop %v1064
    %v1071 = vmul.f32 1.0, %v1070
    %v1072 = vrcp.pop %v1065
    %v1073 = vmul.f32 1.0, %v1072
    %v1074 = vmul.f32 %v1067, 2.0
    %v1075 = vmul.f32 %v1069, 2.0
    %v1076 = vmul.f32 %v1071, 2.0
    %v1077 = vmul.f32 %v1073, 2.0
    %v1078 = vsub.f32 %v1074, 1.0
    %v1079 = vsub.f32 %v1075, 1.0
    %v1080 = vsub.f32 %v1076, 1.0
    %v1081 = vsub.f32 %v1077, 1.0
    %v1082 = vmul.f32 %v1067, %v981
    %v1083 = vmul.f32 %v1069, %v982
    %v1084 = vmul.f32 %v1071, %v983
    %v1085 = vmul.f32 %v1073, %v984
    %1090 = vrot.lane.b32.xlu0 %v1078, 96
    %v1091 = vpop.permute.xlu0 %1090
    %1092 = vrot.lane.b32.xlu0 %v1079, 96
    %v1093 = vpop.permute.xlu0 %1092
    %1094 = vrot.lane.b32.xlu0 %v1080, 96
    %v1095 = vpop.permute.xlu0 %1094
    %1096 = vrot.lane.b32.xlu0 %v1081, 96
    %v1097 = vpop.permute.xlu0 %1096
    %v1102 = vmul.f32 %v1067, %v1091
    %v1103 = vmul.f32 %v1069, %v1093
    %v1104 = vmul.f32 %v1071, %v1095
    %v1105 = vmul.f32 %v1073, %v1097
    %1110 = vrot.lane.b32.xlu0 %v1102, 16
    %v1111 = vpop.permute.xlu0 %1110
    %1112 = vrot.lane.b32.xlu0 %v1103, 16
    %v1113 = vpop.permute.xlu0 %1112
    %1114 = vrot.lane.b32.xlu0 %v1104, 16
    %v1115 = vpop.permute.xlu0 %1114
    %1116 = vrot.lane.b32.xlu0 %v1105, 16
    %v1117 = vpop.permute.xlu0 %1116
    %v1122 = vadd.f32 %v1082, %v1111
    %v1123 = vadd.f32 %v1083, %v1113
    %v1124 = vadd.f32 %v1084, %v1115
    %v1125 = vadd.f32 %v1085, %v1117
    %v1126 = vtanh.pop %v1122
    %v1127 = vtanh.pop %v1123
    %v1128 = vtanh.pop %v1124
    %v1129 = vtanh.pop %v1125
    %1134 = vrot.lane.b32.xlu0 %v1126, 32
    %v1135 = vpop.permute.xlu0 %1134
    %1136 = vrot.lane.b32.xlu0 %v1127, 32
    %v1137 = vpop.permute.xlu0 %1136
    %1138 = vrot.lane.b32.xlu0 %v1128, 32
    %v1139 = vpop.permute.xlu0 %1138
    %1140 = vrot.lane.b32.xlu0 %v1129, 32
    %v1141 = vpop.permute.xlu0 %1140
    %v1146 = vmul.f32 %v1067, %v1135
    %v1147 = vmul.f32 %v1069, %v1137
    %v1148 = vmul.f32 %v1071, %v1139
    %v1149 = vmul.f32 %v1073, %v1141
    %s1150 = sld [smem:[#allocation2 + $0x5]]
    %v1151 = vstv %s1150
    %vm1152 = vcmp.lt.s32.totalorder %v593, %v1151
    %vm1153 = vcmp.lt.s32.totalorder %v594, %v1151
    %vm1154 = vcmp.lt.s32.totalorder %v595, %v1151
    %vm1155 = vcmp.lt.s32.totalorder %v596, %v1151
    %v1156 = vpack.c.bf16 %v1147, %v1146
    %v1157 = vpack.c.bf16 %v1149, %v1148
    %vm1158 = vmpackc.low %vm1152, %vm1152
    %vm1159 = vmpackc.low %vm1153, %vm1153
    %vm1160 = vmpackc.low %vm1154, %vm1154
    %vm1161 = vmpackc.low %vm1155, %vm1155
    %v1162 = vsel %vm1158, 65537, 0
    %v1163 = vsel %vm1159, 65537, 0
    %v1164 = vsel %vm1160, 65537, 0
    %v1165 = vsel %vm1161, 65537, 0
    %v1166 = vunpack.c.l.b16 %v1162
    %v1167 = vunpack.c.l.b16 %v1163
    %v1168 = vunpack.c.l.b16 %v1164
    %v1169 = vunpack.c.l.b16 %v1165
    %v1170 = vpack.c.b16 %v1167, %v1166
    %v1171 = vpack.c.b16 %v1169, %v1168
    %vm1172 = vcmp.ne.s16.totalorder %v1170, 0
    %vm1173 = vcmp.ne.s16.totalorder %v1171, 0
    %v1174 = vsel %vm1172, %v1156, %v979
    %v1175 = vsel %vm1173, %v1157, %v980
    %v1176 = vsel %vm1152, %v1122, %v981
    %v1177 = vsel %vm1153, %v1123, %v982
    %v1178 = vsel %vm1154, %v1124, %v983
    %v1179 = vsel %vm1155, %v1125, %v984
    %1182 = vrot.lane.b32.xlu0 %v1174, 80
    %v1183 = vpop.permute.xlu0 %1182
    %1184 = vrot.lane.b32.xlu0 %v1175, 80
    %v1185 = vpop.permute.xlu0 %1184
    %v1187 = vsel %vm603, %v1183, 0
    %v1190 = vsel %vm603, %v1185, 0
    %1192 = vmatprep.subr.bf16.mxu0 0
    %1193 = vmatpush1.bf16.msra.mxu0 %v601
    %1194 = vmatprep.subr.bf16.mxu0 0
    %1195 = vmatpush1.bf16.msra.mxu0 0
    %1196 = vmatprep.subr.bf16.mxu0 0
    %1197 = vmatpush1.bf16.msra.mxu0 0
    %1198 = vmatprep.subr.bf16.mxu0 0
    %1199 = vmatpush1.bf16.msra.mxu0 0
    %1200 = vmatprep.subr.bf16.mxu0 0
    %1201 = vmatpush1.bf16.msra.mxu0 0
    %1202 = vmatprep.subr.bf16.mxu0 0
    %1203 = vmatpush1.bf16.msra.mxu0 0
    %1204 = vmatprep.subr.bf16.mxu0 0
    %1205 = vmatpush1.bf16.msra.mxu0 0
    %1206 = vmatprep.subr.bf16.mxu0 0
    %1207 = vmatpush1.bf16.msra.mxu0 0
    %1208 = vmatprep.subr.bf16.mxu0 0
    %1209 = vmatpush1.bf16.msra.mxu0 0
    %1210 = vmatprep.subr.bf16.mxu0 0
    %1211 = vmatpush1.bf16.msra.mxu0 0
    %1212 = vmatprep.subr.bf16.mxu0 0
    %1213 = vmatpush1.bf16.msra.mxu0 0
    %1214 = vmatprep.subr.bf16.mxu0 0
    %1215 = vmatpush1.bf16.msra.mxu0 0
    %1216 = vmatprep.subr.bf16.mxu0 0
    %1217 = vmatpush1.bf16.msra.mxu0 0
    %1218 = vmatprep.subr.bf16.mxu0 0
    %1219 = vmatpush1.bf16.msra.mxu0 0
    %1220 = vmatprep.subr.bf16.mxu0 0
    %1221 = vmatpush1.bf16.msra.mxu0 0
    %1222 = vmatprep.subr.bf16.mxu0 0
    %1223 = vmatpush1.bf16.msra.mxu0 0
    %1224 = vmatprep.mubr.bf16.mxu0 0
    %1225 = vmatmul.mubr.bf16.gmra.mrb[0].mxu0 %v1187
    %v1226 = vpop.f32.mrb[0].mxu0
    %v1227 = vadd.f32 0.0, %v1226
    %v1228 = vpop.f32.mrb[0].mxu0
    %v1229 = vpop.f32.mrb[0].mxu0
    %v1230 = vadd.f32 0.0, %v1229
    %v1231 = vpop.f32.mrb[0].mxu0
    %1232 = vmatprep.mubr.bf16.mxu0 0
    %1233 = vmatmul.mubr.bf16.gmra.mrb[0].mxu0 %v1190
    %v1234 = vpop.f32.mrb[0].mxu0
    %v1235 = vadd.f32 0.0, %v1234
    %v1236 = vpop.f32.mrb[0].mxu0
    %v1237 = vpop.f32.mrb[0].mxu0
    %v1238 = vadd.f32 0.0, %v1237
    %v1239 = vpop.f32.mrb[0].mxu0
    %1240 = vdwg.mxu0
    %v1241 = vadd.f32 %v528, %v1227
    %v1242 = vadd.f32 %v531, %v1230
    %v1243 = vadd.f32 %v536, %v1235
    %v1244 = vadd.f32 %v539, %v1238
    %v1245 = vxor.u32 %v1241, 2147483648
    %v1246 = vxor.u32 %v1242, 2147483648
    %v1247 = vxor.u32 %v1243, 2147483648
    %v1248 = vxor.u32 %v1244, 2147483648
    %v1249 = vmul.f32 %v1245, 1.442695
    %v1250 = vpow.pop %v1249
    %v1251 = vmul.f32 %v1246, 1.442695
    %v1252 = vpow.pop %v1251
    %v1253 = vmul.f32 %v1247, 1.442695
    %v1254 = vpow.pop %v1253
    %v1255 = vmul.f32 %v1248, 1.442695
    %v1256 = vpow.pop %v1255
    %v1257 = vadd.f32 %v1250, 1.0
    %v1258 = vadd.f32 %v1252, 1.0
    %v1259 = vadd.f32 %v1254, 1.0
    %v1260 = vadd.f32 %v1256, 1.0
    %v1261 = vrcp.pop %v1257
    %v1262 = vmul.f32 1.0, %v1261
    %v1263 = vrcp.pop %v1258
    %v1264 = vmul.f32 1.0, %v1263
    %v1265 = vrcp.pop %v1259
    %v1266 = vmul.f32 1.0, %v1265
    %v1267 = vrcp.pop %v1260
    %v1268 = vmul.f32 1.0, %v1267
    %v1269 = vmul.f32 %v1262, 2.0
    %v1270 = vmul.f32 %v1264, 2.0
    %v1271 = vmul.f32 %v1266, 2.0
    %v1272 = vmul.f32 %v1268, 2.0
    %v1273 = vsub.f32 %v1269, 1.0
    %v1274 = vsub.f32 %v1270, 1.0
    %v1275 = vsub.f32 %v1271, 1.0
    %v1276 = vsub.f32 %v1272, 1.0
    %v1277 = vmul.f32 %v1262, %v1176
    %v1278 = vmul.f32 %v1264, %v1177
    %v1279 = vmul.f32 %v1266, %v1178
    %v1280 = vmul.f32 %v1268, %v1179
    %1285 = vrot.lane.b32.xlu0 %v1273, 96
    %v1286 = vpop.permute.xlu0 %1285
    %1287 = vrot.lane.b32.xlu0 %v1274, 96
    %v1288 = vpop.permute.xlu0 %1287
    %1289 = vrot.lane.b32.xlu0 %v1275, 96
    %v1290 = vpop.permute.xlu0 %1289
    %1291 = vrot.lane.b32.xlu0 %v1276, 96
    %v1292 = vpop.permute.xlu0 %1291
    %v1297 = vmul.f32 %v1262, %v1286
    %v1298 = vmul.f32 %v1264, %v1288
    %v1299 = vmul.f32 %v1266, %v1290
    %v1300 = vmul.f32 %v1268, %v1292
    %1305 = vrot.lane.b32.xlu0 %v1297, 16
    %v1306 = vpop.permute.xlu0 %1305
    %1307 = vrot.lane.b32.xlu0 %v1298, 16
    %v1308 = vpop.permute.xlu0 %1307
    %1309 = vrot.lane.b32.xlu0 %v1299, 16
    %v1310 = vpop.permute.xlu0 %1309
    %1311 = vrot.lane.b32.xlu0 %v1300, 16
    %v1312 = vpop.permute.xlu0 %1311
    %v1317 = vadd.f32 %v1277, %v1306
    %v1318 = vadd.f32 %v1278, %v1308
    %v1319 = vadd.f32 %v1279, %v1310
    %v1320 = vadd.f32 %v1280, %v1312
    %v1321 = vtanh.pop %v1317
    %v1322 = vtanh.pop %v1318
    %v1323 = vtanh.pop %v1319
    %v1324 = vtanh.pop %v1320
    %1329 = vrot.lane.b32.xlu0 %v1321, 32
    %v1330 = vpop.permute.xlu0 %1329
    %1331 = vrot.lane.b32.xlu0 %v1322, 32
    %v1332 = vpop.permute.xlu0 %1331
    %1333 = vrot.lane.b32.xlu0 %v1323, 32
    %v1334 = vpop.permute.xlu0 %1333
    %1335 = vrot.lane.b32.xlu0 %v1324, 32
    %v1336 = vpop.permute.xlu0 %1335
    %v1341 = vmul.f32 %v1262, %v1330
    %v1342 = vmul.f32 %v1264, %v1332
    %v1343 = vmul.f32 %v1266, %v1334
    %v1344 = vmul.f32 %v1268, %v1336
    %s1345 = sld [smem:[#allocation2 + $0x4]]
    %v1346 = vstv %s1345
    %vm1347 = vcmp.lt.s32.totalorder %v593, %v1346
    %vm1348 = vcmp.lt.s32.totalorder %v594, %v1346
    %vm1349 = vcmp.lt.s32.totalorder %v595, %v1346
    %vm1350 = vcmp.lt.s32.totalorder %v596, %v1346
    %v1351 = vpack.c.bf16 %v1342, %v1341
    %v1352 = vpack.c.bf16 %v1344, %v1343
    %vm1353 = vmpackc.low %vm1347, %vm1347
    %vm1354 = vmpackc.low %vm1348, %vm1348
    %vm1355 = vmpackc.low %vm1349, %vm1349
    %vm1356 = vmpackc.low %vm1350, %vm1350
    %v1357 = vsel %vm1353, 65537, 0
    %v1358 = vsel %vm1354, 65537, 0
    %v1359 = vsel %vm1355, 65537, 0
    %v1360 = vsel %vm1356, 65537, 0
    %v1361 = vunpack.c.l.b16 %v1357
    %v1362 = vunpack.c.l.b16 %v1358
    %v1363 = vunpack.c.l.b16 %v1359
    %v1364 = vunpack.c.l.b16 %v1360
    %v1365 = vpack.c.b16 %v1362, %v1361
    %v1366 = vpack.c.b16 %v1364, %v1363
    %vm1367 = vcmp.ne.s16.totalorder %v1365, 0
    %vm1368 = vcmp.ne.s16.totalorder %v1366, 0
    %v1369 = vsel %vm1367, %v1351, %v1174
    %v1370 = vsel %vm1368, %v1352, %v1175
    %v1371 = vsel %vm1347, %v1317, %v1176
    %v1372 = vsel %vm1348, %v1318, %v1177
    %v1373 = vsel %vm1349, %v1319, %v1178
    %v1374 = vsel %vm1350, %v1320, %v1179
    %1377 = vrot.lane.b32.xlu0 %v1369, 80
    %v1378 = vpop.permute.xlu0 %1377
    %1379 = vrot.lane.b32.xlu0 %v1370, 80
    %v1380 = vpop.permute.xlu0 %1379
    %v1382 = vsel %vm603, %v1378, 0
    %v1385 = vsel %vm603, %v1380, 0
    %1387 = vmatprep.subr.bf16.mxu0 0
    %1388 = vmatpush1.bf16.msra.mxu0 %v601
    %1389 = vmatprep.subr.bf16.mxu0 0
    %1390 = vmatpush1.bf16.msra.mxu0 0
    %1391 = vmatprep.subr.bf16.mxu0 0
    %1392 = vmatpush1.bf16.msra.mxu0 0
    %1393 = vmatprep.subr.bf16.mxu0 0
    %1394 = vmatpush1.bf16.msra.mxu0 0
    %1395 = vmatprep.subr.bf16.mxu0 0
    %1396 = vmatpush1.bf16.msra.mxu0 0
    %1397 = vmatprep.subr.bf16.mxu0 0
    %1398 = vmatpush1.bf16.msra.mxu0 0
    %1399 = vmatprep.subr.bf16.mxu0 0
    %1400 = vmatpush1.bf16.msra.mxu0 0
    %1401 = vmatprep.subr.bf16.mxu0 0
    %1402 = vmatpush1.bf16.msra.mxu0 0
    %1403 = vmatprep.subr.bf16.mxu0 0
    %1404 = vmatpush1.bf16.msra.mxu0 0
    %1405 = vmatprep.subr.bf16.mxu0 0
    %1406 = vmatpush1.bf16.msra.mxu0 0
    %1407 = vmatprep.subr.bf16.mxu0 0
    %1408 = vmatpush1.bf16.msra.mxu0 0
    %1409 = vmatprep.subr.bf16.mxu0 0
    %1410 = vmatpush1.bf16.msra.mxu0 0
    %1411 = vmatprep.subr.bf16.mxu0 0
    %1412 = vmatpush1.bf16.msra.mxu0 0
    %1413 = vmatprep.subr.bf16.mxu0 0
    %1414 = vmatpush1.bf16.msra.mxu0 0
    %1415 = vmatprep.subr.bf16.mxu0 0
    %1416 = vmatpush1.bf16.msra.mxu0 0
    %1417 = vmatprep.subr.bf16.mxu0 0
    %1418 = vmatpush1.bf16.msra.mxu0 0
    %1419 = vmatprep.mubr.bf16.mxu0 0
    %1420 = vmatmul.mubr.bf16.gmra.mrb[0].mxu0 %v1382
    %v1421 = vpop.f32.mrb[0].mxu0
    %v1422 = vadd.f32 0.0, %v1421
    %v1423 = vpop.f32.mrb[0].mxu0
    %v1424 = vpop.f32.mrb[0].mxu0
    %v1425 = vadd.f32 0.0, %v1424
    %v1426 = vpop.f32.mrb[0].mxu0
    %1427 = vmatprep.mubr.bf16.mxu0 0
    %1428 = vmatmul.mubr.bf16.gmra.mrb[0].mxu0 %v1385
    %v1429 = vpop.f32.mrb[0].mxu0
    %v1430 = vadd.f32 0.0, %v1429
    %v1431 = vpop.f32.mrb[0].mxu0
    %v1432 = vpop.f32.mrb[0].mxu0
    %v1433 = vadd.f32 0.0, %v1432
    %v1434 = vpop.f32.mrb[0].mxu0
    %1435 = vdwg.mxu0
    %v1436 = vadd.f32 %v512, %v1422
    %v1437 = vadd.f32 %v515, %v1425
    %v1438 = vadd.f32 %v520, %v1430
    %v1439 = vadd.f32 %v523, %v1433
    %v1440 = vxor.u32 %v1436, 2147483648
    %v1441 = vxor.u32 %v1437, 2147483648
    %v1442 = vxor.u32 %v1438, 2147483648
    %v1443 = vxor.u32 %v1439, 2147483648
    %v1444 = vmul.f32 %v1440, 1.442695
    %v1445 = vpow.pop %v1444
    %v1446 = vmul.f32 %v1441, 1.442695
    %v1447 = vpow.pop %v1446
    %v1448 = vmul.f32 %v1442, 1.442695
    %v1449 = vpow.pop %v1448
    %v1450 = vmul.f32 %v1443, 1.442695
    %v1451 = vpow.pop %v1450
    %v1452 = vadd.f32 %v1445, 1.0
    %v1453 = vadd.f32 %v1447, 1.0
    %v1454 = vadd.f32 %v1449, 1.0
    %v1455 = vadd.f32 %v1451, 1.0
    %v1456 = vrcp.pop %v1452
    %v1457 = vmul.f32 1.0, %v1456
    %v1458 = vrcp.pop %v1453
    %v1459 = vmul.f32 1.0, %v1458
    %v1460 = vrcp.pop %v1454
    %v1461 = vmul.f32 1.0, %v1460
    %v1462 = vrcp.pop %v1455
    %v1463 = vmul.f32 1.0, %v1462
    %v1464 = vmul.f32 %v1457, 2.0
    %v1465 = vmul.f32 %v1459, 2.0
    %v1466 = vmul.f32 %v1461, 2.0
    %v1467 = vmul.f32 %v1463, 2.0
    %v1468 = vsub.f32 %v1464, 1.0
    %v1469 = vsub.f32 %v1465, 1.0
    %v1470 = vsub.f32 %v1466, 1.0
    %v1471 = vsub.f32 %v1467, 1.0
    %v1472 = vmul.f32 %v1457, %v1371
    %v1473 = vmul.f32 %v1459, %v1372
    %v1474 = vmul.f32 %v1461, %v1373
    %v1475 = vmul.f32 %v1463, %v1374
    %1480 = vrot.lane.b32.xlu0 %v1468, 96
    %v1481 = vpop.permute.xlu0 %1480
    %1482 = vrot.lane.b32.xlu0 %v1469, 96
    %v1483 = vpop.permute.xlu0 %1482
    %1484 = vrot.lane.b32.xlu0 %v1470, 96
    %v1485 = vpop.permute.xlu0 %1484
    %1486 = vrot.lane.b32.xlu0 %v1471, 96
    %v1487 = vpop.permute.xlu0 %1486
    %v1492 = vmul.f32 %v1457, %v1481
    %v1493 = vmul.f32 %v1459, %v1483
    %v1494 = vmul.f32 %v1461, %v1485
    %v1495 = vmul.f32 %v1463, %v1487
    %1500 = vrot.lane.b32.xlu0 %v1492, 16
    %v1501 = vpop.permute.xlu0 %1500
    %1502 = vrot.lane.b32.xlu0 %v1493, 16
    %v1503 = vpop.permute.xlu0 %1502
    %1504 = vrot.lane.b32.xlu0 %v1494, 16
    %v1505 = vpop.permute.xlu0 %1504
    %1506 = vrot.lane.b32.xlu0 %v1495, 16
    %v1507 = vpop.permute.xlu0 %1506
    %v1512 = vadd.f32 %v1472, %v1501
    %v1513 = vadd.f32 %v1473, %v1503
    %v1514 = vadd.f32 %v1474, %v1505
    %v1515 = vadd.f32 %v1475, %v1507
    %v1516 = vtanh.pop %v1512
    %v1517 = vtanh.pop %v1513
    %v1518 = vtanh.pop %v1514
    %v1519 = vtanh.pop %v1515
    %1524 = vrot.lane.b32.xlu0 %v1516, 32
    %v1525 = vpop.permute.xlu0 %1524
    %1526 = vrot.lane.b32.xlu0 %v1517, 32
    %v1527 = vpop.permute.xlu0 %1526
    %1528 = vrot.lane.b32.xlu0 %v1518, 32
    %v1529 = vpop.permute.xlu0 %1528
    %1530 = vrot.lane.b32.xlu0 %v1519, 32
    %v1531 = vpop.permute.xlu0 %1530
    %v1536 = vmul.f32 %v1457, %v1525
    %v1537 = vmul.f32 %v1459, %v1527
    %v1538 = vmul.f32 %v1461, %v1529
    %v1539 = vmul.f32 %v1463, %v1531
    %s1540 = sld [smem:[#allocation2 + $0x3]]
    %v1541 = vstv %s1540
    %vm1542 = vcmp.lt.s32.totalorder %v593, %v1541
    %vm1543 = vcmp.lt.s32.totalorder %v594, %v1541
    %vm1544 = vcmp.lt.s32.totalorder %v595, %v1541
    %vm1545 = vcmp.lt.s32.totalorder %v596, %v1541
    %v1546 = vpack.c.bf16 %v1537, %v1536
    %v1547 = vpack.c.bf16 %v1539, %v1538
    %vm1548 = vmpackc.low %vm1542, %vm1542
    %vm1549 = vmpackc.low %vm1543, %vm1543
    %vm1550 = vmpackc.low %vm1544, %vm1544
    %vm1551 = vmpackc.low %vm1545, %vm1545
    %v1552 = vsel %vm1548, 65537, 0
    %v1553 = vsel %vm1549, 65537, 0
    %v1554 = vsel %vm1550, 65537, 0
    %v1555 = vsel %vm1551, 65537, 0
    %v1556 = vunpack.c.l.b16 %v1552
    %v1557 = vunpack.c.l.b16 %v1553
    %v1558 = vunpack.c.l.b16 %v1554
    %v1559 = vunpack.c.l.b16 %v1555
    %v1560 = vpack.c.b16 %v1557, %v1556
    %v1561 = vpack.c.b16 %v1559, %v1558
    %vm1562 = vcmp.ne.s16.totalorder %v1560, 0
    %vm1563 = vcmp.ne.s16.totalorder %v1561, 0
    %v1564 = vsel %vm1562, %v1546, %v1369
    %v1565 = vsel %vm1563, %v1547, %v1370
    %v1566 = vsel %vm1542, %v1512, %v1371
    %v1567 = vsel %vm1543, %v1513, %v1372
    %v1568 = vsel %vm1544, %v1514, %v1373
    %v1569 = vsel %vm1545, %v1515, %v1374
    %1572 = vrot.lane.b32.xlu0 %v1564, 80
    %v1573 = vpop.permute.xlu0 %1572
    %1574 = vrot.lane.b32.xlu0 %v1565, 80
    %v1575 = vpop.permute.xlu0 %1574
    %v1577 = vsel %vm603, %v1573, 0
    %v1580 = vsel %vm603, %v1575, 0
    %1582 = vmatprep.subr.bf16.mxu0 0
    %1583 = vmatpush1.bf16.msra.mxu0 %v601
    %1584 = vmatprep.subr.bf16.mxu0 0
    %1585 = vmatpush1.bf16.msra.mxu0 0
    %1586 = vmatprep.subr.bf16.mxu0 0
    %1587 = vmatpush1.bf16.msra.mxu0 0
    %1588 = vmatprep.subr.bf16.mxu0 0
    %1589 = vmatpush1.bf16.msra.mxu0 0
    %1590 = vmatprep.subr.bf16.mxu0 0
    %1591 = vmatpush1.bf16.msra.mxu0 0
    %1592 = vmatprep.subr.bf16.mxu0 0
    %1593 = vmatpush1.bf16.msra.mxu0 0
    %1594 = vmatprep.subr.bf16.mxu0 0
    %1595 = vmatpush1.bf16.msra.mxu0 0
    %1596 = vmatprep.subr.bf16.mxu0 0
    %1597 = vmatpush1.bf16.msra.mxu0 0
    %1598 = vmatprep.subr.bf16.mxu0 0
    %1599 = vmatpush1.bf16.msra.mxu0 0
    %1600 = vmatprep.subr.bf16.mxu0 0
    %1601 = vmatpush1.bf16.msra.mxu0 0
    %1602 = vmatprep.subr.bf16.mxu0 0
    %1603 = vmatpush1.bf16.msra.mxu0 0
    %1604 = vmatprep.subr.bf16.mxu0 0
    %1605 = vmatpush1.bf16.msra.mxu0 0
    %1606 = vmatprep.subr.bf16.mxu0 0
    %1607 = vmatpush1.bf16.msra.mxu0 0
    %1608 = vmatprep.subr.bf16.mxu0 0
    %1609 = vmatpush1.bf16.msra.mxu0 0
    %1610 = vmatprep.subr.bf16.mxu0 0
    %1611 = vmatpush1.bf16.msra.mxu0 0
    %1612 = vmatprep.subr.bf16.mxu0 0
    %1613 = vmatpush1.bf16.msra.mxu0 0
    %1614 = vmatprep.mubr.bf16.mxu0 0
    %1615 = vmatmul.mubr.bf16.gmra.mrb[0].mxu0 %v1577
    %v1616 = vpop.f32.mrb[0].mxu0
    %v1617 = vadd.f32 0.0, %v1616
    %v1618 = vpop.f32.mrb[0].mxu0
    %v1619 = vpop.f32.mrb[0].mxu0
    %v1620 = vadd.f32 0.0, %v1619
    %v1621 = vpop.f32.mrb[0].mxu0
    %1622 = vmatprep.mubr.bf16.mxu0 0
    %1623 = vmatmul.mubr.bf16.gmra.mrb[0].mxu0 %v1580
    %v1624 = vpop.f32.mrb[0].mxu0
    %v1625 = vadd.f32 0.0, %v1624
    %v1626 = vpop.f32.mrb[0].mxu0
    %v1627 = vpop.f32.mrb[0].mxu0
    %v1628 = vadd.f32 0.0, %v1627
    %v1629 = vpop.f32.mrb[0].mxu0
    %1630 = vdwg.mxu0
    %v1631 = vadd.f32 %v496, %v1617
    %v1632 = vadd.f32 %v499, %v1620
    %v1633 = vadd.f32 %v504, %v1625
    %v1634 = vadd.f32 %v507, %v1628
    %v1635 = vxor.u32 %v1631, 2147483648
    %v1636 = vxor.u32 %v1632, 2147483648
    %v1637 = vxor.u32 %v1633, 2147483648
    %v1638 = vxor.u32 %v1634, 2147483648
    %v1639 = vmul.f32 %v1635, 1.442695
    %v1640 = vpow.pop %v1639
    %v1641 = vmul.f32 %v1636, 1.442695
    %v1642 = vpow.pop %v1641
    %v1643 = vmul.f32 %v1637, 1.442695
    %v1644 = vpow.pop %v1643
    %v1645 = vmul.f32 %v1638, 1.442695
    %v1646 = vpow.pop %v1645
    %v1647 = vadd.f32 %v1640, 1.0
    %v1648 = vadd.f32 %v1642, 1.0
    %v1649 = vadd.f32 %v1644, 1.0
    %v1650 = vadd.f32 %v1646, 1.0
    %v1651 = vrcp.pop %v1647
    %v1652 = vmul.f32 1.0, %v1651
    %v1653 = vrcp.pop %v1648
    %v1654 = vmul.f32 1.0, %v1653
    %v1655 = vrcp.pop %v1649
    %v1656 = vmul.f32 1.0, %v1655
    %v1657 = vrcp.pop %v1650
    %v1658 = vmul.f32 1.0, %v1657
    %v1659 = vmul.f32 %v1652, 2.0
    %v1660 = vmul.f32 %v1654, 2.0
    %v1661 = vmul.f32 %v1656, 2.0
    %v1662 = vmul.f32 %v1658, 2.0
    %v1663 = vsub.f32 %v1659, 1.0
    %v1664 = vsub.f32 %v1660, 1.0
    %v1665 = vsub.f32 %v1661, 1.0
    %v1666 = vsub.f32 %v1662, 1.0
    %v1667 = vmul.f32 %v1652, %v1566
    %v1668 = vmul.f32 %v1654, %v1567
    %v1669 = vmul.f32 %v1656, %v1568
    %v1670 = vmul.f32 %v1658, %v1569
    %1675 = vrot.lane.b32.xlu0 %v1663, 96
    %v1676 = vpop.permute.xlu0 %1675
    %1677 = vrot.lane.b32.xlu0 %v1664, 96
    %v1678 = vpop.permute.xlu0 %1677
    %1679 = vrot.lane.b32.xlu0 %v1665, 96
    %v1680 = vpop.permute.xlu0 %1679
    %1681 = vrot.lane.b32.xlu0 %v1666, 96
    %v1682 = vpop.permute.xlu0 %1681
    %v1687 = vmul.f32 %v1652, %v1676
    %v1688 = vmul.f32 %v1654, %v1678
    %v1689 = vmul.f32 %v1656, %v1680
    %v1690 = vmul.f32 %v1658, %v1682
    %1695 = vrot.lane.b32.xlu0 %v1687, 16
    %v1696 = vpop.permute.xlu0 %1695
    %1697 = vrot.lane.b32.xlu0 %v1688, 16
    %v1698 = vpop.permute.xlu0 %1697
    %1699 = vrot.lane.b32.xlu0 %v1689, 16
    %v1700 = vpop.permute.xlu0 %1699
    %1701 = vrot.lane.b32.xlu0 %v1690, 16
    %v1702 = vpop.permute.xlu0 %1701
    %v1707 = vadd.f32 %v1667, %v1696
    %v1708 = vadd.f32 %v1668, %v1698
    %v1709 = vadd.f32 %v1669, %v1700
    %v1710 = vadd.f32 %v1670, %v1702
    %v1711 = vtanh.pop %v1707
    %v1712 = vtanh.pop %v1708
    %v1713 = vtanh.pop %v1709
    %v1714 = vtanh.pop %v1710
    %1719 = vrot.lane.b32.xlu0 %v1711, 32
    %v1720 = vpop.permute.xlu0 %1719
    %1721 = vrot.lane.b32.xlu0 %v1712, 32
    %v1722 = vpop.permute.xlu0 %1721
    %1723 = vrot.lane.b32.xlu0 %v1713, 32
    %v1724 = vpop.permute.xlu0 %1723
    %1725 = vrot.lane.b32.xlu0 %v1714, 32
    %v1726 = vpop.permute.xlu0 %1725
    %v1731 = vmul.f32 %v1652, %v1720
    %v1732 = vmul.f32 %v1654, %v1722
    %v1733 = vmul.f32 %v1656, %v1724
    %v1734 = vmul.f32 %v1658, %v1726
    %s1735 = sld [smem:[#allocation2 + $0x2]]
    %v1736 = vstv %s1735
    %vm1737 = vcmp.lt.s32.totalorder %v593, %v1736
    %vm1738 = vcmp.lt.s32.totalorder %v594, %v1736
    %vm1739 = vcmp.lt.s32.totalorder %v595, %v1736
    %vm1740 = vcmp.lt.s32.totalorder %v596, %v1736
    %v1741 = vpack.c.bf16 %v1732, %v1731
    %v1742 = vpack.c.bf16 %v1734, %v1733
    %vm1743 = vmpackc.low %vm1737, %vm1737
    %vm1744 = vmpackc.low %vm1738, %vm1738
    %vm1745 = vmpackc.low %vm1739, %vm1739
    %vm1746 = vmpackc.low %vm1740, %vm1740
    %v1747 = vsel %vm1743, 65537, 0
    %v1748 = vsel %vm1744, 65537, 0
    %v1749 = vsel %vm1745, 65537, 0
    %v1750 = vsel %vm1746, 65537, 0
    %v1751 = vunpack.c.l.b16 %v1747
    %v1752 = vunpack.c.l.b16 %v1748
    %v1753 = vunpack.c.l.b16 %v1749
    %v1754 = vunpack.c.l.b16 %v1750
    %v1755 = vpack.c.b16 %v1752, %v1751
    %v1756 = vpack.c.b16 %v1754, %v1753
    %vm1757 = vcmp.ne.s16.totalorder %v1755, 0
    %vm1758 = vcmp.ne.s16.totalorder %v1756, 0
    %v1759 = vsel %vm1757, %v1741, %v1564
    %v1760 = vsel %vm1758, %v1742, %v1565
    %v1761 = vsel %vm1737, %v1707, %v1566
    %v1762 = vsel %vm1738, %v1708, %v1567
    %v1763 = vsel %vm1739, %v1709, %v1568
    %v1764 = vsel %vm1740, %v1710, %v1569
    %1767 = vrot.lane.b32.xlu0 %v1759, 80
    %v1768 = vpop.permute.xlu0 %1767
    %1769 = vrot.lane.b32.xlu0 %v1760, 80
    %v1770 = vpop.permute.xlu0 %1769
    %v1772 = vsel %vm603, %v1768, 0
    %v1775 = vsel %vm603, %v1770, 0
    %1777 = vmatprep.subr.bf16.mxu0 0
    %1778 = vmatpush1.bf16.msra.mxu0 %v601
    %1779 = vmatprep.subr.bf16.mxu0 0
    %1780 = vmatpush1.bf16.msra.mxu0 0
    %1781 = vmatprep.subr.bf16.mxu0 0
    %1782 = vmatpush1.bf16.msra.mxu0 0
    %1783 = vmatprep.subr.bf16.mxu0 0
    %1784 = vmatpush1.bf16.msra.mxu0 0
    %1785 = vmatprep.subr.bf16.mxu0 0
    %1786 = vmatpush1.bf16.msra.mxu0 0
    %1787 = vmatprep.subr.bf16.mxu0 0
    %1788 = vmatpush1.bf16.msra.mxu0 0
    %1789 = vmatprep.subr.bf16.mxu0 0
    %1790 = vmatpush1.bf16.msra.mxu0 0
    %1791 = vmatprep.subr.bf16.mxu0 0
    %1792 = vmatpush1.bf16.msra.mxu0 0
    %1793 = vmatprep.subr.bf16.mxu0 0
    %1794 = vmatpush1.bf16.msra.mxu0 0
    %1795 = vmatprep.subr.bf16.mxu0 0
    %1796 = vmatpush1.bf16.msra.mxu0 0
    %1797 = vmatprep.subr.bf16.mxu0 0
    %1798 = vmatpush1.bf16.msra.mxu0 0
    %1799 = vmatprep.subr.bf16.mxu0 0
    %1800 = vmatpush1.bf16.msra.mxu0 0
    %1801 = vmatprep.subr.bf16.mxu0 0
    %1802 = vmatpush1.bf16.msra.mxu0 0
    %1803 = vmatprep.subr.bf16.mxu0 0
    %1804 = vmatpush1.bf16.msra.mxu0 0
    %1805 = vmatprep.subr.bf16.mxu0 0
    %1806 = vmatpush1.bf16.msra.mxu0 0
    %1807 = vmatprep.subr.bf16.mxu0 0
    %1808 = vmatpush1.bf16.msra.mxu0 0
    %1809 = vmatprep.mubr.bf16.mxu0 0
    %1810 = vmatmul.mubr.bf16.gmra.mrb[0].mxu0 %v1772
    %v1811 = vpop.f32.mrb[0].mxu0
    %v1812 = vadd.f32 0.0, %v1811
    %v1813 = vpop.f32.mrb[0].mxu0
    %v1814 = vpop.f32.mrb[0].mxu0
    %v1815 = vadd.f32 0.0, %v1814
    %v1816 = vpop.f32.mrb[0].mxu0
    %1817 = vmatprep.mubr.bf16.mxu0 0
    %1818 = vmatmul.mubr.bf16.gmra.mrb[0].mxu0 %v1775
    %v1819 = vpop.f32.mrb[0].mxu0
    %v1820 = vadd.f32 0.0, %v1819
    %v1821 = vpop.f32.mrb[0].mxu0
    %v1822 = vpop.f32.mrb[0].mxu0
    %v1823 = vadd.f32 0.0, %v1822
    %v1824 = vpop.f32.mrb[0].mxu0
    %1825 = vdwg.mxu0
    %v1826 = vadd.f32 %v480, %v1812
    %v1827 = vadd.f32 %v483, %v1815
    %v1828 = vadd.f32 %v488, %v1820
    %v1829 = vadd.f32 %v491, %v1823
    %v1830 = vxor.u32 %v1826, 2147483648
    %v1831 = vxor.u32 %v1827, 2147483648
    %v1832 = vxor.u32 %v1828, 2147483648
    %v1833 = vxor.u32 %v1829, 2147483648
    %v1834 = vmul.f32 %v1830, 1.442695
    %v1835 = vpow.pop %v1834
    %v1836 = vmul.f32 %v1831, 1.442695
    %v1837 = vpow.pop %v1836
    %v1838 = vmul.f32 %v1832, 1.442695
    %v1839 = vpow.pop %v1838
    %v1840 = vmul.f32 %v1833, 1.442695
    %v1841 = vpow.pop %v1840
    %v1842 = vadd.f32 %v1835, 1.0
    %v1843 = vadd.f32 %v1837, 1.0
    %v1844 = vadd.f32 %v1839, 1.0
    %v1845 = vadd.f32 %v1841, 1.0
    %v1846 = vrcp.pop %v1842
    %v1847 = vmul.f32 1.0, %v1846
    %v1848 = vrcp.pop %v1843
    %v1849 = vmul.f32 1.0, %v1848
    %v1850 = vrcp.pop %v1844
    %v1851 = vmul.f32 1.0, %v1850
    %v1852 = vrcp.pop %v1845
    %v1853 = vmul.f32 1.0, %v1852
    %v1854 = vmul.f32 %v1847, 2.0
    %v1855 = vmul.f32 %v1849, 2.0
    %v1856 = vmul.f32 %v1851, 2.0
    %v1857 = vmul.f32 %v1853, 2.0
    %v1858 = vsub.f32 %v1854, 1.0
    %v1859 = vsub.f32 %v1855, 1.0
    %v1860 = vsub.f32 %v1856, 1.0
    %v1861 = vsub.f32 %v1857, 1.0
    %v1862 = vmul.f32 %v1847, %v1761
    %v1863 = vmul.f32 %v1849, %v1762
    %v1864 = vmul.f32 %v1851, %v1763
    %v1865 = vmul.f32 %v1853, %v1764
    %1870 = vrot.lane.b32.xlu0 %v1858, 96
    %v1871 = vpop.permute.xlu0 %1870
    %1872 = vrot.lane.b32.xlu0 %v1859, 96
    %v1873 = vpop.permute.xlu0 %1872
    %1874 = vrot.lane.b32.xlu0 %v1860, 96
    %v1875 = vpop.permute.xlu0 %1874
    %1876 = vrot.lane.b32.xlu0 %v1861, 96
    %v1877 = vpop.permute.xlu0 %1876
    %v1882 = vmul.f32 %v1847, %v1871
    %v1883 = vmul.f32 %v1849, %v1873
    %v1884 = vmul.f32 %v1851, %v1875
    %v1885 = vmul.f32 %v1853, %v1877
    %1890 = vrot.lane.b32.xlu0 %v1882, 16
    %v1891 = vpop.permute.xlu0 %1890
    %1892 = vrot.lane.b32.xlu0 %v1883, 16
    %v1893 = vpop.permute.xlu0 %1892
    %1894 = vrot.lane.b32.xlu0 %v1884, 16
    %v1895 = vpop.permute.xlu0 %1894
    %1896 = vrot.lane.b32.xlu0 %v1885, 16
    %v1897 = vpop.permute.xlu0 %1896
    %v1902 = vadd.f32 %v1862, %v1891
    %v1903 = vadd.f32 %v1863, %v1893
    %v1904 = vadd.f32 %v1864, %v1895
    %v1905 = vadd.f32 %v1865, %v1897
    %v1906 = vtanh.pop %v1902
    %v1907 = vtanh.pop %v1903
    %v1908 = vtanh.pop %v1904
    %v1909 = vtanh.pop %v1905
    %1914 = vrot.lane.b32.xlu0 %v1906, 32
    %v1915 = vpop.permute.xlu0 %1914
    %1916 = vrot.lane.b32.xlu0 %v1907, 32
    %v1917 = vpop.permute.xlu0 %1916
    %1918 = vrot.lane.b32.xlu0 %v1908, 32
    %v1919 = vpop.permute.xlu0 %1918
    %1920 = vrot.lane.b32.xlu0 %v1909, 32
    %v1921 = vpop.permute.xlu0 %1920
    %v1926 = vmul.f32 %v1847, %v1915
    %v1927 = vmul.f32 %v1849, %v1917
    %v1928 = vmul.f32 %v1851, %v1919
    %v1929 = vmul.f32 %v1853, %v1921
    %s1930 = sld [smem:[#allocation2 + $0x1]]
    %v1931 = vstv %s1930
    %vm1932 = vcmp.lt.s32.totalorder %v593, %v1931
    %vm1933 = vcmp.lt.s32.totalorder %v594, %v1931
    %vm1934 = vcmp.lt.s32.totalorder %v595, %v1931
    %vm1935 = vcmp.lt.s32.totalorder %v596, %v1931
    %v1936 = vpack.c.bf16 %v1927, %v1926
    %v1937 = vpack.c.bf16 %v1929, %v1928
    %vm1938 = vmpackc.low %vm1932, %vm1932
    %vm1939 = vmpackc.low %vm1933, %vm1933
    %vm1940 = vmpackc.low %vm1934, %vm1934
    %vm1941 = vmpackc.low %vm1935, %vm1935
    %v1942 = vsel %vm1938, 65537, 0
    %v1943 = vsel %vm1939, 65537, 0
    %v1944 = vsel %vm1940, 65537, 0
    %v1945 = vsel %vm1941, 65537, 0
    %v1946 = vunpack.c.l.b16 %v1942
    %v1947 = vunpack.c.l.b16 %v1943
    %v1948 = vunpack.c.l.b16 %v1944
    %v1949 = vunpack.c.l.b16 %v1945
    %v1950 = vpack.c.b16 %v1947, %v1946
    %v1951 = vpack.c.b16 %v1949, %v1948
    %vm1952 = vcmp.ne.s16.totalorder %v1950, 0
    %vm1953 = vcmp.ne.s16.totalorder %v1951, 0
    %v1954 = vsel %vm1952, %v1936, %v1759
    %v1955 = vsel %vm1953, %v1937, %v1760
    %v1956 = vsel %vm1932, %v1902, %v1761
    %v1957 = vsel %vm1933, %v1903, %v1762
    %v1958 = vsel %vm1934, %v1904, %v1763
    %v1959 = vsel %vm1935, %v1905, %v1764
    %1962 = vrot.lane.b32.xlu0 %v1954, 80
    %v1963 = vpop.permute.xlu0 %1962
    %1964 = vrot.lane.b32.xlu0 %v1955, 80
    %v1965 = vpop.permute.xlu0 %1964
    %v1967 = vsel %vm603, %v1963, 0
    %v1970 = vsel %vm603, %v1965, 0
    %1972 = vmatprep.subr.bf16.mxu0 0
    %1973 = vmatpush1.bf16.msra.mxu0 %v601
    %1974 = vmatprep.subr.bf16.mxu0 0
    %1975 = vmatpush1.bf16.msra.mxu0 0
    %1976 = vmatprep.subr.bf16.mxu0 0
    %1977 = vmatpush1.bf16.msra.mxu0 0
    %1978 = vmatprep.subr.bf16.mxu0 0
    %1979 = vmatpush1.bf16.msra.mxu0 0
    %1980 = vmatprep.subr.bf16.mxu0 0
    %1981 = vmatpush1.bf16.msra.mxu0 0
    %1982 = vmatprep.subr.bf16.mxu0 0
    %1983 = vmatpush1.bf16.msra.mxu0 0
    %1984 = vmatprep.subr.bf16.mxu0 0
    %1985 = vmatpush1.bf16.msra.mxu0 0
    %1986 = vmatprep.subr.bf16.mxu0 0
    %1987 = vmatpush1.bf16.msra.mxu0 0
    %1988 = vmatprep.subr.bf16.mxu0 0
    %1989 = vmatpush1.bf16.msra.mxu0 0
    %1990 = vmatprep.subr.bf16.mxu0 0
    %1991 = vmatpush1.bf16.msra.mxu0 0
    %1992 = vmatprep.subr.bf16.mxu0 0
    %1993 = vmatpush1.bf16.msra.mxu0 0
    %1994 = vmatprep.subr.bf16.mxu0 0
    %1995 = vmatpush1.bf16.msra.mxu0 0
    %1996 = vmatprep.subr.bf16.mxu0 0
    %1997 = vmatpush1.bf16.msra.mxu0 0
    %1998 = vmatprep.subr.bf16.mxu0 0
    %1999 = vmatpush1.bf16.msra.mxu0 0
    %2000 = vmatprep.subr.bf16.mxu0 0
    %2001 = vmatpush1.bf16.msra.mxu0 0
    %2002 = vmatprep.subr.bf16.mxu0 0
    %2003 = vmatpush1.bf16.msra.mxu0 0
    %2004 = vmatprep.mubr.bf16.mxu0 0
    %2005 = vmatmul.mubr.bf16.gmra.mrb[0].mxu0 %v1967
    %v2006 = vpop.f32.mrb[0].mxu0
    %v2007 = vadd.f32 0.0, %v2006
    %v2008 = vpop.f32.mrb[0].mxu0
    %v2009 = vpop.f32.mrb[0].mxu0
    %v2010 = vadd.f32 0.0, %v2009
    %v2011 = vpop.f32.mrb[0].mxu0
    %2012 = vmatprep.mubr.bf16.mxu0 0
    %2013 = vmatmul.mubr.bf16.gmra.mrb[0].mxu0 %v1970
    %v2014 = vpop.f32.mrb[0].mxu0
    %v2015 = vadd.f32 0.0, %v2014
    %v2016 = vpop.f32.mrb[0].mxu0
    %v2017 = vpop.f32.mrb[0].mxu0
    %v2018 = vadd.f32 0.0, %v2017
    %v2019 = vpop.f32.mrb[0].mxu0
    %2020 = vdwg.mxu0
    %v2021 = vadd.f32 %v464, %v2007
    %v2022 = vadd.f32 %v467, %v2010
    %v2023 = vadd.f32 %v472, %v2015
    %v2024 = vadd.f32 %v475, %v2018
    %v2025 = vxor.u32 %v2021, 2147483648
    %v2026 = vxor.u32 %v2022, 2147483648
    %v2027 = vxor.u32 %v2023, 2147483648
    %v2028 = vxor.u32 %v2024, 2147483648
    %v2029 = vmul.f32 %v2025, 1.442695
    %v2030 = vpow.pop %v2029
    %v2031 = vmul.f32 %v2026, 1.442695
    %v2032 = vpow.pop %v2031
    %v2033 = vmul.f32 %v2027, 1.442695
    %v2034 = vpow.pop %v2033
    %v2035 = vmul.f32 %v2028, 1.442695
    %v2036 = vpow.pop %v2035
    %v2037 = vadd.f32 %v2030, 1.0
    %v2038 = vadd.f32 %v2032, 1.0
    %v2039 = vadd.f32 %v2034, 1.0
    %v2040 = vadd.f32 %v2036, 1.0
    %v2041 = vrcp.pop %v2037
    %v2042 = vmul.f32 1.0, %v2041
    %v2043 = vrcp.pop %v2038
    %v2044 = vmul.f32 1.0, %v2043
    %v2045 = vrcp.pop %v2039
    %v2046 = vmul.f32 1.0, %v2045
    %v2047 = vrcp.pop %v2040
    %v2048 = vmul.f32 1.0, %v2047
    %v2049 = vmul.f32 %v2042, 2.0
    %v2050 = vmul.f32 %v2044, 2.0
    %v2051 = vmul.f32 %v2046, 2.0
    %v2052 = vmul.f32 %v2048, 2.0
    %v2053 = vsub.f32 %v2049, 1.0
    %v2054 = vsub.f32 %v2050, 1.0
    %v2055 = vsub.f32 %v2051, 1.0
    %v2056 = vsub.f32 %v2052, 1.0
    %v2057 = vmul.f32 %v2042, %v1956
    %v2058 = vmul.f32 %v2044, %v1957
    %v2059 = vmul.f32 %v2046, %v1958
    %v2060 = vmul.f32 %v2048, %v1959
    %2065 = vrot.lane.b32.xlu0 %v2053, 96
    %v2066 = vpop.permute.xlu0 %2065
    %2067 = vrot.lane.b32.xlu0 %v2054, 96
    %v2068 = vpop.permute.xlu0 %2067
    %2069 = vrot.lane.b32.xlu0 %v2055, 96
    %v2070 = vpop.permute.xlu0 %2069
    %2071 = vrot.lane.b32.xlu0 %v2056, 96
    %v2072 = vpop.permute.xlu0 %2071
    %v2077 = vmul.f32 %v2042, %v2066
    %v2078 = vmul.f32 %v2044, %v2068
    %v2079 = vmul.f32 %v2046, %v2070
    %v2080 = vmul.f32 %v2048, %v2072
    %2085 = vrot.lane.b32.xlu0 %v2077, 16
    %v2086 = vpop.permute.xlu0 %2085
    %2087 = vrot.lane.b32.xlu0 %v2078, 16
    %v2088 = vpop.permute.xlu0 %2087
    %2089 = vrot.lane.b32.xlu0 %v2079, 16
    %v2090 = vpop.permute.xlu0 %2089
    %2091 = vrot.lane.b32.xlu0 %v2080, 16
    %v2092 = vpop.permute.xlu0 %2091
    %v2097 = vadd.f32 %v2057, %v2086
    %v2098 = vadd.f32 %v2058, %v2088
    %v2099 = vadd.f32 %v2059, %v2090
    %v2100 = vadd.f32 %v2060, %v2092
    %v2101 = vtanh.pop %v2097
    %v2102 = vtanh.pop %v2098
    %v2103 = vtanh.pop %v2099
    %v2104 = vtanh.pop %v2100
    %2109 = vrot.lane.b32.xlu0 %v2101, 32
    %v2110 = vpop.permute.xlu0 %2109
    %2111 = vrot.lane.b32.xlu0 %v2102, 32
    %v2112 = vpop.permute.xlu0 %2111
    %2113 = vrot.lane.b32.xlu0 %v2103, 32
    %v2114 = vpop.permute.xlu0 %2113
    %2115 = vrot.lane.b32.xlu0 %v2104, 32
    %v2116 = vpop.permute.xlu0 %2115
    %v2121 = vmul.f32 %v2042, %v2110
    %v2122 = vmul.f32 %v2044, %v2112
    %v2123 = vmul.f32 %v2046, %v2114
    %v2124 = vmul.f32 %v2048, %v2116
    %s2125 = sld [smem:[#allocation2]]
    %v2126 = vstv %s2125
    %vm2127 = vcmp.lt.s32.totalorder %v593, %v2126
    %vm2128 = vcmp.lt.s32.totalorder %v594, %v2126
    %vm2129 = vcmp.lt.s32.totalorder %v595, %v2126
    %vm2130 = vcmp.lt.s32.totalorder %v596, %v2126
    %v2131 = vpack.c.bf16 %v2122, %v2121
    %v2132 = vpack.c.bf16 %v2124, %v2123
    %vm2133 = vmpackc.low %vm2127, %vm2127
    %vm2134 = vmpackc.low %vm2128, %vm2128
    %vm2135 = vmpackc.low %vm2129, %vm2129
    %vm2136 = vmpackc.low %vm2130, %vm2130
    %v2137 = vsel %vm2133, 65537, 0
    %v2138 = vsel %vm2134, 65537, 0
    %v2139 = vsel %vm2135, 65537, 0
    %v2140 = vsel %vm2136, 65537, 0
    %v2141 = vunpack.c.l.b16 %v2137
    %v2142 = vunpack.c.l.b16 %v2138
    %v2143 = vunpack.c.l.b16 %v2139
    %v2144 = vunpack.c.l.b16 %v2140
    %v2145 = vpack.c.b16 %v2142, %v2141
    %v2146 = vpack.c.b16 %v2144, %v2143
    %vm2147 = vcmp.ne.s16.totalorder %v2145, 0
    %vm2148 = vcmp.ne.s16.totalorder %v2146, 0
    %v2149 = vsel %vm2147, %v2131, %v1954
    %v2150 = vsel %vm2148, %v2132, %v1955
    %v2151 = vld [vmem:[%s8] sm:$0xf]
    %v2152 = vld [vmem:[%s8 + $0x4] sm:$0xf]
    %2155 = vrot.lane.b32.xlu0 %v2149, 80
    %v2156 = vpop.permute.xlu0 %2155
    %2157 = vrot.lane.b32.xlu0 %v2150, 80
    %v2158 = vpop.permute.xlu0 %2157
    %v2161 = vunpack.c.l.b16 %v2151
    %v2162 = vunpack.c.l.b16 %v2152
    %v2163 = vpack.c.b16 %v2162, %v2161
    %v2166 = vsel %vm603, %v2156, 0
    %v2169 = vsel %vm603, %v2158, 0
    %2171 = vmatprep.subr.bf16.mxu0 0
    %2172 = vmatpush1.bf16.msra.mxu0 %v2163
    %2173 = vmatprep.subr.bf16.mxu0 0
    %2174 = vmatpush1.bf16.msra.mxu0 0
    %2175 = vmatprep.subr.bf16.mxu0 0
    %2176 = vmatpush1.bf16.msra.mxu0 0
    %2177 = vmatprep.subr.bf16.mxu0 0
    %2178 = vmatpush1.bf16.msra.mxu0 0
    %2179 = vmatprep.subr.bf16.mxu0 0
    %2180 = vmatpush1.bf16.msra.mxu0 0
    %2181 = vmatprep.subr.bf16.mxu0 0
    %2182 = vmatpush1.bf16.msra.mxu0 0
    %2183 = vmatprep.subr.bf16.mxu0 0
    %2184 = vmatpush1.bf16.msra.mxu0 0
    %2185 = vmatprep.subr.bf16.mxu0 0
    %2186 = vmatpush1.bf16.msra.mxu0 0
    %2187 = vmatprep.subr.bf16.mxu0 0
    %2188 = vmatpush1.bf16.msra.mxu0 0
    %2189 = vmatprep.subr.bf16.mxu0 0
    %2190 = vmatpush1.bf16.msra.mxu0 0
    %2191 = vmatprep.subr.bf16.mxu0 0
    %2192 = vmatpush1.bf16.msra.mxu0 0
    %2193 = vmatprep.subr.bf16.mxu0 0
    %2194 = vmatpush1.bf16.msra.mxu0 0
    %2195 = vmatprep.subr.bf16.mxu0 0
    %2196 = vmatpush1.bf16.msra.mxu0 0
    %2197 = vmatprep.subr.bf16.mxu0 0
    %2198 = vmatpush1.bf16.msra.mxu0 0
    %2199 = vmatprep.subr.bf16.mxu0 0
    %2200 = vmatpush1.bf16.msra.mxu0 0
    %2201 = vmatprep.subr.bf16.mxu0 0
    %2202 = vmatpush1.bf16.msra.mxu0 0
    %2203 = vmatprep.mubr.bf16.mxu0 0
    %2204 = vmatmul.mubr.bf16.gmra.mrb[0].mxu0 %v2166
    %v2205 = vpop.f32.mrb[0].mxu0
    %v2206 = vadd.f32 0.0, %v2205
    %v2207 = vpop.f32.mrb[0].mxu0
    %v2208 = vpop.f32.mrb[0].mxu0
    %v2209 = vadd.f32 0.0, %v2208
    %v2210 = vpop.f32.mrb[0].mxu0
    %2211 = vmatprep.mubr.bf16.mxu0 0
    %2212 = vmatmul.mubr.bf16.gmra.mrb[0].mxu0 %v2169
    %v2213 = vpop.f32.mrb[0].mxu0
    %v2214 = vadd.f32 0.0, %v2213
    %v2215 = vpop.f32.mrb[0].mxu0
    %v2216 = vpop.f32.mrb[0].mxu0
    %v2217 = vadd.f32 0.0, %v2216
    %v2218 = vpop.f32.mrb[0].mxu0
    %2219 = vdwg.mxu0
    %2222 = vrot.lane.b32.xlu0 %v242, 80
    %v2223 = vpop.permute.xlu0 %2222
    %2224 = vrot.lane.b32.xlu0 %v243, 80
    %v2225 = vpop.permute.xlu0 %2224
    %v2228 = vunpack.c.l.b16 %v244
    %v2229 = vunpack.c.l.b16 %v245
    %v2230 = vpack.c.b16 %v2229, %v2228
    %v2233 = vsel %vm603, %v2223, 0
    %v2236 = vsel %vm603, %v2225, 0
    %2238 = vmatprep.subr.bf16.mxu0 0
    %2239 = vmatpush1.bf16.msra.mxu0 %v2230
    %2240 = vmatprep.subr.bf16.mxu0 0
    %2241 = vmatpush1.bf16.msra.mxu0 0
    %2242 = vmatprep.subr.bf16.mxu0 0
    %2243 = vmatpush1.bf16.msra.mxu0 0
    %2244 = vmatprep.subr.bf16.mxu0 0
    %2245 = vmatpush1.bf16.msra.mxu0 0
    %2246 = vmatprep.subr.bf16.mxu0 0
    %2247 = vmatpush1.bf16.msra.mxu0 0
    %2248 = vmatprep.subr.bf16.mxu0 0
    %2249 = vmatpush1.bf16.msra.mxu0 0
    %2250 = vmatprep.subr.bf16.mxu0 0
    %2251 = vmatpush1.bf16.msra.mxu0 0
    %2252 = vmatprep.subr.bf16.mxu0 0
    %2253 = vmatpush1.bf16.msra.mxu0 0
    %2254 = vmatprep.subr.bf16.mxu0 0
    %2255 = vmatpush1.bf16.msra.mxu0 0
    %2256 = vmatprep.subr.bf16.mxu0 0
    %2257 = vmatpush1.bf16.msra.mxu0 0
    %2258 = vmatprep.subr.bf16.mxu0 0
    %2259 = vmatpush1.bf16.msra.mxu0 0
    %2260 = vmatprep.subr.bf16.mxu0 0
    %2261 = vmatpush1.bf16.msra.mxu0 0
    %2262 = vmatprep.subr.bf16.mxu0 0
    %2263 = vmatpush1.bf16.msra.mxu0 0
    %2264 = vmatprep.subr.bf16.mxu0 0
    %2265 = vmatpush1.bf16.msra.mxu0 0
    %2266 = vmatprep.subr.bf16.mxu0 0
    %2267 = vmatpush1.bf16.msra.mxu0 0
    %2268 = vmatprep.subr.bf16.mxu0 0
    %2269 = vmatpush1.bf16.msra.mxu0 0
    %2270 = vmatprep.mubr.bf16.mxu0 0
    %2271 = vmatmul.mubr.bf16.gmra.mrb[0].mxu0 %v2233
    %v2272 = vpop.f32.mrb[0].mxu0
    %v2273 = vadd.f32 %v2206, %v2272
    %v2274 = vpop.f32.mrb[0].mxu0
    %v2275 = vpop.f32.mrb[0].mxu0
    %v2276 = vadd.f32 %v2209, %v2275
    %v2277 = vpop.f32.mrb[0].mxu0
    %2278 = vmatprep.mubr.bf16.mxu0 0
    %2279 = vmatmul.mubr.bf16.gmra.mrb[0].mxu0 %v2236
    %v2280 = vpop.f32.mrb[0].mxu0
    %v2281 = vadd.f32 %v2214, %v2280
    %v2282 = vpop.f32.mrb[0].mxu0
    %v2283 = vpop.f32.mrb[0].mxu0
    %v2284 = vadd.f32 %v2217, %v2283
    %v2285 = vpop.f32.mrb[0].mxu0
    %2286 = vdwg.mxu0
    %2287 = vst [vmem:[#allocation5] sm:$0xff] %v2273
    %2288 = vst [vmem:[#allocation5 + $0x8] sm:$0xff] %v2276
    %2289 = vst [vmem:[#allocation5 + $0x10] sm:$0xff] %v2281
    %2290 = vst [vmem:[#allocation5 + $0x18] sm:$0xff] %v2284
    // Predicated region
    $region42: #{_forward_fused_device.1} parent=1 // pred_check
      _
    $region43: #{_forward_fused_device.1} parent=1 // pred_check_branch
      %2292 = sbr.rel (0) target = $region45
    $region44: #{_forward_fused_device.1} parent=1 // pred_region
      %s2294 = ssub.s32 512, 512
      %2295 = vsyncadd [#allocation3], %s2294
      %s2296 = sshll.u32 [#allocation5], 4
      %s2297 = int_to_ptr.vmem [resolvable:$true] %s2296
      %2302 = dma.vmem_to_hbm [thread:$0]  %s2297, 512, %s9, [#allocation3], 128, 128, 8
    $region45: #{_forward_fused_device.1} parent=1 // pred_fallthru
      _
    // Predicated region
    $region46: #{_forward_fused_device.1} parent=1 // pred_check
      _
    $region47: #{_forward_fused_device.1} parent=1 // pred_check_branch
      %2304 = sbr.rel (0) target = $region49
    $region48: #{_forward_fused_device.1} parent=1 // pred_region
      %2305 = dma.done [#allocation3], 512
    $region49: #{_forward_fused_device.1} parent=1 // pred_fallthru
      _
    %2306 = vsyncpa [#allocation3], 1
    %2307 = vsyncpa [#allocation4], 1

</llo_original>
